<compile_context>
chip_gen: v6e
topology: v6e:2x2x1
jax: 0.10.0
libtpu: 0.0.40
codegen_flags: <defaults>
</compile_context>

<pallas_src>
import functools

import numpy as np
import jax
import jax.numpy as jnp
from jax.experimental import pallas as pl
from jax.experimental.pallas import tpu as pltpu


# --------------------------------------------------------------------------- #
# Fused Pallas kernel
# --------------------------------------------------------------------------- #
# Space-to-depth conventions (2x2 blocks, phase-major lanes):
#   x_s2d[n, HH, (pi*2+pj)*9*Cin + WW*Cin + ci]  = Xpad [n, 2*HH+pi, 2*WW+pj, ci]
#   a2   [n, HH, (PH*2+PW)*9*C1  + WW*C1  + ci]  = A1pad[n, 2*HH+PH, 2*WW+PW, ci]
# where Xpad / A1pad are the zero-padded (pad=1) NHWC inputs of block 1 / 2.
# In these coordinates both 3x3 convs reduce to 2 row-taps (qi in {0,1}), each a
# single matmul against a host-built RHS that absorbs the whole W direction.

def _fused_net_kernel(x_ref, w1_ref, b1_ref, w2_ref, b2_ref, wc_ref, bc_ref,
                      out_ref, a2_ref, flat_ref):
    nb = x_ref.shape[0]          # batch tile
    hb = 8                       # 8x8 output blocks per image (16x16 spatial)
    c1 = 8                       # block-1 output channels
    kin = x_ref.shape[-1]        # 144 = 4 phases * 9 * Cin
    l1 = w1_ref.shape[-1]        # 256 = 4 phases * 8 * C1
    l2in = a2_ref.shape[-1]      # 288 = 4 phases * 9 * C1
    l2 = w2_ref.shape[-1]        # 64  = 8 * C2
    blk = hb * c1                # 64-lane phase block in the block-1 output
    wbc = 9 * c1                 # 72-lane phase block in a2

    # ---------------- block 1: Conv3x3 s1 p1 + BN + ReLU (2 MXU dots) ----------
    acc1 = jnp.zeros((nb * hb, l1), jnp.float32)
    for qi in range(2):
        lhs = x_ref[:, qi:qi + hb, :].reshape(nb * hb, kin).astype(jnp.bfloat16)
        acc1 = acc1 + jnp.dot(lhs, w1_ref[qi],
                              preferred_element_type=jnp.float32)
    a1 = jnp.maximum(acc1 + b1_ref[...], 0.0)              # (nb*8, 256) f32
    a1 = a1.reshape(nb, hb, l1)

    # ------ re-pad + phase shuffle into block-2's s2d input layout (VMEM) ------
    # block-1 output phase (ph,pw) lands at block-2 phase (1-ph,1-pw) with a
    # (+ph,+pw) block shift; borders left zero are exactly the pad=1 ring.
    a2_ref[...] = jnp.zeros_like(a2_ref)
    for ph in range(2):
        for pw in range(2):
            src0 = (ph * 2 + pw) * blk
            dst0 = ((1 - ph) * 2 + (1 - pw)) * wbc + pw * c1
            a2_ref[:, ph:ph + hb, dst0:dst0 + blk] = a1[:, :, src0:src0 + blk]

    # ---------------- block 2: Conv3x3 s2 p1 + BN + ReLU (2 MXU dots) ----------
    acc2 = jnp.zeros((nb * hb, l2), jnp.float32)
    for qi in range(2):
        lhs = a2_ref[:, qi:qi + hb, :].reshape(nb * hb, l2in).astype(jnp.bfloat16)
        acc2 = acc2 + jnp.dot(lhs, w2_ref[qi],
                              preferred_element_type=jnp.float32)
    a2o = jnp.maximum(acc2 + b2_ref[...], 0.0)              # (nb*8, 64) f32

    # ---- flatten (ho, wo, c2) into lanes (classifier weight is pre-permuted) --
    for n in range(nb):
        for ho in range(hb):
            flat_ref[n:n + 1, ho * l2:(ho + 1) * l2] = \
                a2o[n * hb + ho:n * hb + ho + 1, :]

    # ---------------- classifier: [nb,512] @ [512,128] + bias ------------------
    feats = flat_ref[...].astype(jnp.bfloat16)
    logits = jnp.dot(feats, wc_ref[...], preferred_element_type=jnp.float32)
    out_ref[...] = logits + bc_ref[...]                     # (nb, 128) lane-dense


# --------------------------------------------------------------------------- #
# Host-side layout plumbing (runs outside the kernel, input tensor is tiny)
# --------------------------------------------------------------------------- #
def _space_to_depth_input(x_nchw):
    """NCHW -> padded (pad=1) NHWC -> 2x2 space-to-depth, phase-major lanes.

    Returns [N, 9, 4*9*Cin]; lane index = (pi*2+pj)*9*Cin + WW*Cin + ci.
    """
    n, cin, h, w = x_nchw.shape
    x = jnp.transpose(x_nchw, (0, 2, 3, 1))                       # NHWC
    xp = jnp.pad(x, ((0, 0), (1, 1), (1, 1), (0, 0)))             # [N,18,18,C]
    hb, wb = (h + 2) // 2, (w + 2) // 2                           # 9, 9
    xp = xp.reshape(n, hb, 2, wb, 2, cin)                         # n,HH,pi,WW,pj,ci
    xp = jnp.transpose(xp, (0, 1, 2, 4, 3, 5))                    # n,HH,pi,pj,WW,ci
    return xp.reshape(n, hb, 4 * wb * cin)


@functools.partial(jax.jit, static_argnames=("num_classes", "batch_tile"))
def convnet_forward(x_nchw, kp, *, num_classes, batch_tile):
    """Exact forward semantics of BasicBlockWiseConvNet (eval mode)."""
    n = x_nchw.shape[0]
    nb = batch_tile
    assert n % nb == 0
    x_s2d = _space_to_depth_input(x_nchw).astype(jnp.float32)     # [N, 9, 144]

    out = pl.pallas_call(
        _fused_net_kernel,
        out_shape=jax.ShapeDtypeStruct((n, kp["wc"].shape[1]), jnp.float32),
        grid=(n // nb,),
        in_specs=[
            pl.BlockSpec((nb,) + x_s2d.shape[1:], lambda i: (i, 0, 0)),  # x
            pl.BlockSpec(kp["w1"].shape, lambda i: (0, 0, 0)),           # rhs1
            pl.BlockSpec(kp["b1"].shape, lambda i: (0, 0)),              # b1
            pl.BlockSpec(kp["w2"].shape, lambda i: (0, 0, 0)),           # rhs2
            pl.BlockSpec(kp["b2"].shape, lambda i: (0, 0)),              # b2
            pl.BlockSpec(kp["wc"].shape, lambda i: (0, 0)),              # wc
            pl.BlockSpec(kp["bc"].shape, lambda i: (0, 0)),              # bc
        ],
        out_specs=pl.BlockSpec((nb, kp["wc"].shape[1]), lambda i: (i, 0)),
        scratch_shapes=[
            pltpu.VMEM((nb, 9, kp["w2"].shape[1]), jnp.float32),  # a2  (nb,9,288)
            pltpu.VMEM((nb, kp["wc"].shape[0]), jnp.float32),     # flat (nb,512)
        ],
        compiler_params=pltpu.CompilerParams(
            dimension_semantics=("parallel",)),
    )(x_s2d, kp["w1"], kp["b1"], kp["w2"], kp["b2"], kp["wc"], kp["bc"])

    return out[:, :num_classes]


# --------------------------------------------------------------------------- #
# Parameter construction (PyTorch layout) and one-time host-side preparation
# --------------------------------------------------------------------------- #
def init_torch_params(key, cin=4, c1=8, c2=8, spatial=16, num_classes=10):
    """Parameters exactly as the PyTorch module holds them (init_model('he_fout'))."""
    k1, k2, k3 = jax.random.split(key, 3)

    def he_fout(k, cout, cin_, kh, kw):
        std = (2.0 / (kh * kw * cout)) ** 0.5
        return std * jax.random.normal(k, (cout, cin_, kh, kw), jnp.float32)

    def bn(c):                       # eval-mode running stats after init_model
        return dict(gamma=np.ones(c, np.float32), beta=np.zeros(c, np.float32),
                    mean=np.zeros(c, np.float32), var=np.ones(c, np.float32))

    feat = c2 * (spatial // 2) ** 2
    return dict(
        conv1=np.asarray(he_fout(k1, c1, cin, 3, 3)), bn1=bn(c1),
        conv2=np.asarray(he_fout(k2, c2, c1, 3, 3)), bn2=bn(c2),
        fc_w=np.asarray(0.02 * jax.random.normal(k3, (num_classes, feat),
                                                 jnp.float32)),
        fc_b=np.zeros(num_classes, np.float32),
    )


def _fold_bn(w_oihw, bn, eps=1e-5):
    scale = bn["gamma"] / np.sqrt(bn["var"] + eps)
    bias = bn["beta"] - bn["mean"] * scale
    return w_oihw * scale[:, None, None, None], bias


def _build_rhs1(w1f, wb=9, wo=8):
    """Block-1 (stride-1) per-row-tap RHS matrices, shape (2, 4*wb*Cin, 4*wo*C1).

    out1(h=2hh+ph, w=2ww+pw, c1) = sum_qi  x_s2d[hh+qi, :] @ rhs[qi]
    rows    : (pi*2+pj)*wb*Cin + WW*Cin + ci      (input lanes)
    columns : (ph*2+pw)*wo*C1  + ww*C1  + c1      (output lanes)
    """
    c1, cin = w1f.shape[0], w1f.shape[1]
    rhs = np.zeros((2, 4 * wb * cin, 4 * wo * c1), np.float32)
    for qi in range(2):
        for pi in range(2):
            for pj in range(2):
                for WW in range(wb):
                    li0 = (pi * 2 + pj) * wb * cin + WW * cin
                    for ph in range(2):
                        di = 2 * qi + pi - ph
                        if not 0 <= di < 3:
                            continue
                        for pw in range(2):
                            for ww in range(wo):
                                dj = 2 * WW + pj - 2 * ww - pw
                                if not 0 <= dj < 3:
                                    continue
                                lo0 = (ph * 2 + pw) * wo * c1 + ww * c1
                                rhs[qi, li0:li0 + cin, lo0:lo0 + c1] = \
                                    w1f[:, :, di, dj].T
    return rhs


def _build_rhs2(w2f, wb=9, wo=8):
    """Block-2 (stride-2) per-row-tap RHS matrices, shape (2, 4*wb*C1, wo*C2).

    out2(ho, wo, co) = sum_qi  a2[ho+qi, :] @ rhs[qi]
    rows    : (PH*2+PW)*wb*C1 + WW*C1 + ci        (a2 lanes)
    columns : wo*C2 + co                          (output lanes)
    """
    c2, c1 = w2f.shape[0], w2f.shape[1]
    rhs = np.zeros((2, 4 * wb * c1, wo * c2), np.float32)
    for qi in range(2):
        for PH in range(2):
            di = 2 * qi + PH
            if not 0 <= di < 3:
                continue
            for PW in range(2):
                for WW in range(wb):
                    li0 = (PH * 2 + PW) * wb * c1 + WW * c1
                    for w_o in range(wo):
                        dj = 2 * WW + PW - 2 * w_o
                        if not 0 <= dj < 3:
                            continue
                        rhs[qi, li0:li0 + c1, w_o * c2:w_o * c2 + c2] = \
                            w2f[:, :, di, dj].T
    return rhs


def prepare_kernel_params(p, lane_pad=128):
    """One-time host-side prep: BN fold, s2d weight matrices, classifier permute."""
    w1f, b1 = _fold_bn(p["conv1"], p["bn1"])
    w2f, b2 = _fold_bn(p["conv2"], p["bn2"])
    c2 = w2f.shape[0]

    rhs1 = _build_rhs1(w1f)                       # (2, 144, 256)
    rhs2 = _build_rhs2(w2f)                       # (2, 288, 64)
    b1_vec = np.tile(b1, 4 * 8)[None, :]          # bias per lane = b1[lane % 8]
    b2_vec = np.tile(b2, 8)[None, :]

    # classifier: reorder features from PyTorch NCHW flatten (co,ho,wo) to the
    # kernel's (ho,wo,co) order, pad classes to 128 lanes for a lane-dense store.
    ncls, feat = p["fc_w"].shape
    wc = p["fc_w"].reshape(ncls, c2, 8, 8)        # (k, co, ho, wo)
    wc = np.transpose(wc, (2, 3, 1, 0)).reshape(feat, ncls)
    wc_pad = np.zeros((feat, lane_pad), np.float32)
    wc_pad[:, :ncls] = wc
    bc_pad = np.zeros((1, lane_pad), np.float32)
    bc_pad[0, :ncls] = p["fc_b"]

    return dict(
        w1=jnp.asarray(rhs1, jnp.bfloat16),
        b1=jnp.asarray(b1_vec, jnp.float32),
        w2=jnp.asarray(rhs2, jnp.bfloat16),
        b2=jnp.asarray(b2_vec, jnp.float32),
        wc=jnp.asarray(wc_pad, jnp.bfloat16),
        bc=jnp.asarray(bc_pad, jnp.float32),
    )


# --------------------------------------------------------------------------- #
# main
# --------------------------------------------------------------------------- #
if __name__ == "__main__":
    key = jax.random.PRNGKey(0)
    kx, kparam = jax.random.split(key)

    N, C, H, W = 2, 4, 16, 16
    NUM_CLASSES = 10
    x = jax.random.normal(kx, (N, C, H, W), jnp.float32)          # NCHW input

    torch_params = init_torch_params(kparam, cin=C, spatial=H,
                                     num_classes=NUM_CLASSES)
    kernel_params = prepare_kernel_params(torch_params)

    logits = convnet_forward(x, kernel_params,
                             num_classes=NUM_CLASSES, batch_tile=N)
    jax.block_until_ready(logits)

    assert logits.shape == (N, NUM_CLASSES), logits.shape
    assert bool(jnp.all(jnp.isfinite(logits)))
    print("KERNEL_OK")
</pallas_src>

<mosaic_0001>
module attributes {stable_mosaic.version = 11 : i64} {
  func.func @_fused_net_kernel(%arg0: i32, %arg1: memref<2x9x144xf32, #tpu.memory_space<vmem>>, %arg2: memref<2x144x256xbf16, #tpu.memory_space<vmem>>, %arg3: memref<1x256xf32, #tpu.memory_space<vmem>>, %arg4: memref<2x288x64xbf16, #tpu.memory_space<vmem>>, %arg5: memref<1x64xf32, #tpu.memory_space<vmem>>, %arg6: memref<512x128xbf16, #tpu.memory_space<vmem>>, %arg7: memref<1x128xf32, #tpu.memory_space<vmem>>, %arg8: memref<2x128xf32, #tpu.memory_space<vmem>>, %arg9: memref<2x9x288xf32, #tpu.memory_space<vmem>>, %arg10: memref<2x512xf32, #tpu.memory_space<vmem>>) attributes {dimension_semantics = [#tpu.dimension_semantics<parallel>], iteration_bounds = array<i64: 1>, scalar_prefetch = 0 : i64, scratch_operands = 2 : i64, tpu.core_type = #tpu.core_type<tc>, window_params = [{transform_indices = @transform_0, window_bounds = array<i64: 2, 9, 144>}, {pipeline_mode = #tpu.pipeline_mode<synchronous>, transform_indices = @transform_1, window_bounds = array<i64: 2, 144, 256>}, {pipeline_mode = #tpu.pipeline_mode<synchronous>, transform_indices = @transform_2, window_bounds = array<i64: 1, 256>}, {pipeline_mode = #tpu.pipeline_mode<synchronous>, transform_indices = @transform_3, window_bounds = array<i64: 2, 288, 64>}, {pipeline_mode = #tpu.pipeline_mode<synchronous>, transform_indices = @transform_4, window_bounds = array<i64: 1, 64>}, {pipeline_mode = #tpu.pipeline_mode<synchronous>, transform_indices = @transform_5, window_bounds = array<i64: 512, 128>}, {pipeline_mode = #tpu.pipeline_mode<synchronous>, transform_indices = @transform_6, window_bounds = array<i64: 1, 128>}, {transform_indices = @transform_7, window_bounds = array<i64: 2, 128>}]} {
    %cst = arith.constant 0.000000e+00 : f32
    %0 = vector.broadcast %cst : f32 to vector<16x256xf32>
    %c0 = arith.constant 0 : index
    %c0_0 = arith.constant 0 : index
    %c0_1 = arith.constant 0 : index
    %1 = vector.load %arg1[%c0, %c0_0, %c0_1] : memref<2x9x144xf32, #tpu.memory_space<vmem>>, vector<2x8x144xf32>
    %2 = vector.shape_cast %1 : vector<2x8x144xf32> to vector<16x144xf32>
    %3 = arith.truncf %2 : vector<16x144xf32> to vector<16x144xbf16>
    %c0_2 = arith.constant 0 : index
    %c0_3 = arith.constant 0 : index
    %c0_4 = arith.constant 0 : index
    %4 = vector.load %arg2[%c0_2, %c0_3, %c0_4] : memref<2x144x256xbf16, #tpu.memory_space<vmem>>, vector<1x144x256xbf16>
    %5 = vector.shape_cast %4 : vector<1x144x256xbf16> to vector<144x256xbf16>
    %cst_5 = arith.constant dense<0.000000e+00> : vector<16x256xf32>
    %6 = tpu.matmul %3, %5, %cst_5 {dimension_numbers = #tpu.dot_dimension_numbers<[1], [0], [0], [1], [0, 0, 1, 1], [], []>} : vector<16x144xbf16>, vector<144x256xbf16>, vector<16x256xf32> -> vector<16x256xf32>
    %7 = arith.addf %0, %6 : vector<16x256xf32>
    %c0_6 = arith.constant 0 : index
    %c1 = arith.constant 1 : index
    %c0_7 = arith.constant 0 : index
    %8 = vector.load %arg1[%c0_6, %c1, %c0_7] : memref<2x9x144xf32, #tpu.memory_space<vmem>>, vector<2x8x144xf32>
    %9 = vector.shape_cast %8 : vector<2x8x144xf32> to vector<16x144xf32>
    %10 = arith.truncf %9 : vector<16x144xf32> to vector<16x144xbf16>
    %c1_8 = arith.constant 1 : index
    %c0_9 = arith.constant 0 : index
    %c0_10 = arith.constant 0 : index
    %11 = vector.load %arg2[%c1_8, %c0_9, %c0_10] : memref<2x144x256xbf16, #tpu.memory_space<vmem>>, vector<1x144x256xbf16>
    %12 = vector.shape_cast %11 : vector<1x144x256xbf16> to vector<144x256xbf16>
    %cst_11 = arith.constant dense<0.000000e+00> : vector<16x256xf32>
    %13 = tpu.matmul %10, %12, %cst_11 {dimension_numbers = #tpu.dot_dimension_numbers<[1], [0], [0], [1], [0, 0, 1, 1], [], []>} : vector<16x144xbf16>, vector<144x256xbf16>, vector<16x256xf32> -> vector<16x256xf32>
    %14 = arith.addf %7, %13 : vector<16x256xf32>
    %c0_12 = arith.constant 0 : index
    %c0_13 = arith.constant 0 : index
    %15 = vector.load %arg3[%c0_12, %c0_13] : memref<1x256xf32, #tpu.memory_space<vmem>>, vector<1x256xf32>
    %16 = vector.broadcast %15 : vector<1x256xf32> to vector<16x256xf32>
    %17 = arith.addf %14, %16 : vector<16x256xf32>
    %cst_14 = arith.constant 0.000000e+00 : f32
    %18 = vector.broadcast %cst_14 : f32 to vector<16x256xf32>
    %19 = arith.maximumf %17, %18 : vector<16x256xf32>
    %20 = vector.shape_cast %19 : vector<16x256xf32> to vector<2x8x256xf32>
    %cst_15 = arith.constant 0.000000e+00 : f32
    %21 = vector.broadcast %cst_15 : f32 to vector<2x9x288xf32>
    %c0_16 = arith.constant 0 : index
    %c0_17 = arith.constant 0 : index
    %c0_18 = arith.constant 0 : index
    %22 = vector.load %arg9[%c0_16, %c0_17, %c0_18] : memref<2x9x288xf32, #tpu.memory_space<vmem>>, vector<2x9x288xf32>
    tpu.vector_store %arg9[%c0_16, %c0_17, %c0_18], %21 {strides = array<i32>} : memref<2x9x288xf32, #tpu.memory_space<vmem>>, vector<2x9x288xf32>,
    %23 = vector.extract_strided_slice %20 {offsets = [0, 0, 0], sizes = [2, 8, 64], strides = [1, 1, 1]} : vector<2x8x256xf32> to vector<2x8x64xf32>
    %c0_19 = arith.constant 0 : index
    %c0_20 = arith.constant 0 : index
    %c216 = arith.constant 216 : index
    %24 = vector.load %arg9[%c0_19, %c0_20, %c216] : memref<2x9x288xf32, #tpu.memory_space<vmem>>, vector<2x8x64xf32>
    tpu.vector_store %arg9[%c0_19, %c0_20, %c216], %23 {strides = array<i32>} : memref<2x9x288xf32, #tpu.memory_space<vmem>>, vector<2x8x64xf32>,
    %25 = vector.extract_strided_slice %20 {offsets = [0, 0, 64], sizes = [2, 8, 64], strides = [1, 1, 1]} : vector<2x8x256xf32> to vector<2x8x64xf32>
    %c0_21 = arith.constant 0 : index
    %c0_22 = arith.constant 0 : index
    %c152 = arith.constant 152 : index
    %26 = vector.load %arg9[%c0_21, %c0_22, %c152] : memref<2x9x288xf32, #tpu.memory_space<vmem>>, vector<2x8x64xf32>
    tpu.vector_store %arg9[%c0_21, %c0_22, %c152], %25 {strides = array<i32>} : memref<2x9x288xf32, #tpu.memory_space<vmem>>, vector<2x8x64xf32>,
    %27 = vector.extract_strided_slice %20 {offsets = [0, 0, 128], sizes = [2, 8, 64], strides = [1, 1, 1]} : vector<2x8x256xf32> to vector<2x8x64xf32>
    %c0_23 = arith.constant 0 : index
    %c1_24 = arith.constant 1 : index
    %c72 = arith.constant 72 : index
    %28 = vector.load %arg9[%c0_23, %c1_24, %c72] : memref<2x9x288xf32, #tpu.memory_space<vmem>>, vector<2x8x64xf32>
    tpu.vector_store %arg9[%c0_23, %c1_24, %c72], %27 {strides = array<i32>} : memref<2x9x288xf32, #tpu.memory_space<vmem>>, vector<2x8x64xf32>,
    %29 = vector.extract_strided_slice %20 {offsets = [0, 0, 192], sizes = [2, 8, 64], strides = [1, 1, 1]} : vector<2x8x256xf32> to vector<2x8x64xf32>
    %c0_25 = arith.constant 0 : index
    %c1_26 = arith.constant 1 : index
    %c8 = arith.constant 8 : index
    %30 = vector.load %arg9[%c0_25, %c1_26, %c8] : memref<2x9x288xf32, #tpu.memory_space<vmem>>, vector<2x8x64xf32>
    tpu.vector_store %arg9[%c0_25, %c1_26, %c8], %29 {strides = array<i32>} : memref<2x9x288xf32, #tpu.memory_space<vmem>>, vector<2x8x64xf32>,
    %cst_27 = arith.constant 0.000000e+00 : f32
    %31 = vector.broadcast %cst_27 : f32 to vector<16x64xf32>
    %c0_28 = arith.constant 0 : index
    %c0_29 = arith.constant 0 : index
    %c0_30 = arith.constant 0 : index
    %32 = vector.load %arg9[%c0_28, %c0_29, %c0_30] : memref<2x9x288xf32, #tpu.memory_space<vmem>>, vector<2x8x288xf32>
    %33 = vector.shape_cast %32 : vector<2x8x288xf32> to vector<16x288xf32>
    %34 = arith.truncf %33 : vector<16x288xf32> to vector<16x288xbf16>
    %c0_31 = arith.constant 0 : index
    %c0_32 = arith.constant 0 : index
    %c0_33 = arith.constant 0 : index
    %35 = vector.load %arg4[%c0_31, %c0_32, %c0_33] : memref<2x288x64xbf16, #tpu.memory_space<vmem>>, vector<1x288x64xbf16>
    %36 = vector.shape_cast %35 : vector<1x288x64xbf16> to vector<288x64xbf16>
    %cst_34 = arith.constant dense<0.000000e+00> : vector<16x64xf32>
    %37 = tpu.matmul %34, %36, %cst_34 {dimension_numbers = #tpu.dot_dimension_numbers<[1], [0], [0], [1], [0, 0, 1, 1], [], []>} : vector<16x288xbf16>, vector<288x64xbf16>, vector<16x64xf32> -> vector<16x64xf32>
    %38 = arith.addf %31, %37 : vector<16x64xf32>
    %c0_35 = arith.constant 0 : index
    %c1_36 = arith.constant 1 : index
    %c0_37 = arith.constant 0 : index
    %39 = vector.load %arg9[%c0_35, %c1_36, %c0_37] : memref<2x9x288xf32, #tpu.memory_space<vmem>>, vector<2x8x288xf32>
    %40 = vector.shape_cast %39 : vector<2x8x288xf32> to vector<16x288xf32>
    %41 = arith.truncf %40 : vector<16x288xf32> to vector<16x288xbf16>
    %c1_38 = arith.constant 1 : index
    %c0_39 = arith.constant 0 : index
    %c0_40 = arith.constant 0 : index
    %42 = vector.load %arg4[%c1_38, %c0_39, %c0_40] : memref<2x288x64xbf16, #tpu.memory_space<vmem>>, vector<1x288x64xbf16>
    %43 = vector.shape_cast %42 : vector<1x288x64xbf16> to vector<288x64xbf16>
    %cst_41 = arith.constant dense<0.000000e+00> : vector<16x64xf32>
    %44 = tpu.matmul %41, %43, %cst_41 {dimension_numbers = #tpu.dot_dimension_numbers<[1], [0], [0], [1], [0, 0, 1, 1], [], []>} : vector<16x288xbf16>, vector<288x64xbf16>, vector<16x64xf32> -> vector<16x64xf32>
    %45 = arith.addf %38, %44 : vector<16x64xf32>
    %c0_42 = arith.constant 0 : index
    %c0_43 = arith.constant 0 : index
    %46 = vector.load %arg5[%c0_42, %c0_43] : memref<1x64xf32, #tpu.memory_space<vmem>>, vector<1x64xf32>
    %47 = vector.broadcast %46 : vector<1x64xf32> to vector<16x64xf32>
    %48 = arith.addf %45, %47 : vector<16x64xf32>
    %cst_44 = arith.constant 0.000000e+00 : f32
    %49 = vector.broadcast %cst_44 : f32 to vector<16x64xf32>
    %50 = arith.maximumf %48, %49 : vector<16x64xf32>
    %51 = vector.extract_strided_slice %50 {offsets = [0, 0], sizes = [1, 64], strides = [1, 1]} : vector<16x64xf32> to vector<1x64xf32>
    %c0_45 = arith.constant 0 : index
    %c0_46 = arith.constant 0 : index
    %52 = vector.load %arg10[%c0_45, %c0_46] : memref<2x512xf32, #tpu.memory_space<vmem>>, vector<1x64xf32>
    tpu.vector_store %arg10[%c0_45, %c0_46], %51 {strides = array<i32>} : memref<2x512xf32, #tpu.memory_space<vmem>>, vector<1x64xf32>,
    %53 = vector.extract_strided_slice %50 {offsets = [1, 0], sizes = [1, 64], strides = [1, 1]} : vector<16x64xf32> to vector<1x64xf32>
    %c0_47 = arith.constant 0 : index
    %c64 = arith.constant 64 : index
    %54 = vector.load %arg10[%c0_47, %c64] : memref<2x512xf32, #tpu.memory_space<vmem>>, vector<1x64xf32>
    tpu.vector_store %arg10[%c0_47, %c64], %53 {strides = array<i32>} : memref<2x512xf32, #tpu.memory_space<vmem>>, vector<1x64xf32>,
    %55 = vector.extract_strided_slice %50 {offsets = [2, 0], sizes = [1, 64], strides = [1, 1]} : vector<16x64xf32> to vector<1x64xf32>
    %c0_48 = arith.constant 0 : index
    %c128 = arith.constant 128 : index
    %56 = vector.load %arg10[%c0_48, %c128] : memref<2x512xf32, #tpu.memory_space<vmem>>, vector<1x64xf32>
    tpu.vector_store %arg10[%c0_48, %c128], %55 {strides = array<i32>} : memref<2x512xf32, #tpu.memory_space<vmem>>, vector<1x64xf32>,
    %57 = vector.extract_strided_slice %50 {offsets = [3, 0], sizes = [1, 64], strides = [1, 1]} : vector<16x64xf32> to vector<1x64xf32>
    %c0_49 = arith.constant 0 : index
    %c192 = arith.constant 192 : index
    %58 = vector.load %arg10[%c0_49, %c192] : memref<2x512xf32, #tpu.memory_space<vmem>>, vector<1x64xf32>
    tpu.vector_store %arg10[%c0_49, %c192], %57 {strides = array<i32>} : memref<2x512xf32, #tpu.memory_space<vmem>>, vector<1x64xf32>,
    %59 = vector.extract_strided_slice %50 {offsets = [4, 0], sizes = [1, 64], strides = [1, 1]} : vector<16x64xf32> to vector<1x64xf32>
    %c0_50 = arith.constant 0 : index
    %c256 = arith.constant 256 : index
    %60 = vector.load %arg10[%c0_50, %c256] : memref<2x512xf32, #tpu.memory_space<vmem>>, vector<1x64xf32>
    tpu.vector_store %arg10[%c0_50, %c256], %59 {strides = array<i32>} : memref<2x512xf32, #tpu.memory_space<vmem>>, vector<1x64xf32>,
    %61 = vector.extract_strided_slice %50 {offsets = [5, 0], sizes = [1, 64], strides = [1, 1]} : vector<16x64xf32> to vector<1x64xf32>
    %c0_51 = arith.constant 0 : index
    %c320 = arith.constant 320 : index
    %62 = vector.load %arg10[%c0_51, %c320] : memref<2x512xf32, #tpu.memory_space<vmem>>, vector<1x64xf32>
    tpu.vector_store %arg10[%c0_51, %c320], %61 {strides = array<i32>} : memref<2x512xf32, #tpu.memory_space<vmem>>, vector<1x64xf32>,
    %63 = vector.extract_strided_slice %50 {offsets = [6, 0], sizes = [1, 64], strides = [1, 1]} : vector<16x64xf32> to vector<1x64xf32>
    %c0_52 = arith.constant 0 : index
    %c384 = arith.constant 384 : index
    %64 = vector.load %arg10[%c0_52, %c384] : memref<2x512xf32, #tpu.memory_space<vmem>>, vector<1x64xf32>
    tpu.vector_store %arg10[%c0_52, %c384], %63 {strides = array<i32>} : memref<2x512xf32, #tpu.memory_space<vmem>>, vector<1x64xf32>,
    %65 = vector.extract_strided_slice %50 {offsets = [7, 0], sizes = [1, 64], strides = [1, 1]} : vector<16x64xf32> to vector<1x64xf32>
    %c0_53 = arith.constant 0 : index
    %c448 = arith.constant 448 : index
    %66 = vector.load %arg10[%c0_53, %c448] : memref<2x512xf32, #tpu.memory_space<vmem>>, vector<1x64xf32>
    tpu.vector_store %arg10[%c0_53, %c448], %65 {strides = array<i32>} : memref<2x512xf32, #tpu.memory_space<vmem>>, vector<1x64xf32>,
    %67 = vector.extract_strided_slice %50 {offsets = [8, 0], sizes = [1, 64], strides = [1, 1]} : vector<16x64xf32> to vector<1x64xf32>
    %c1_54 = arith.constant 1 : index
    %c0_55 = arith.constant 0 : index
    %68 = vector.load %arg10[%c1_54, %c0_55] : memref<2x512xf32, #tpu.memory_space<vmem>>, vector<1x64xf32>
    tpu.vector_store %arg10[%c1_54, %c0_55], %67 {strides = array<i32>} : memref<2x512xf32, #tpu.memory_space<vmem>>, vector<1x64xf32>,
    %69 = vector.extract_strided_slice %50 {offsets = [9, 0], sizes = [1, 64], strides = [1, 1]} : vector<16x64xf32> to vector<1x64xf32>
    %c1_56 = arith.constant 1 : index
    %c64_57 = arith.constant 64 : index
    %70 = vector.load %arg10[%c1_56, %c64_57] : memref<2x512xf32, #tpu.memory_space<vmem>>, vector<1x64xf32>
    tpu.vector_store %arg10[%c1_56, %c64_57], %69 {strides = array<i32>} : memref<2x512xf32, #tpu.memory_space<vmem>>, vector<1x64xf32>,
    %71 = vector.extract_strided_slice %50 {offsets = [10, 0], sizes = [1, 64], strides = [1, 1]} : vector<16x64xf32> to vector<1x64xf32>
    %c1_58 = arith.constant 1 : index
    %c128_59 = arith.constant 128 : index
    %72 = vector.load %arg10[%c1_58, %c128_59] : memref<2x512xf32, #tpu.memory_space<vmem>>, vector<1x64xf32>
    tpu.vector_store %arg10[%c1_58, %c128_59], %71 {strides = array<i32>} : memref<2x512xf32, #tpu.memory_space<vmem>>, vector<1x64xf32>,
    %73 = vector.extract_strided_slice %50 {offsets = [11, 0], sizes = [1, 64], strides = [1, 1]} : vector<16x64xf32> to vector<1x64xf32>
    %c1_60 = arith.constant 1 : index
    %c192_61 = arith.constant 192 : index
    %74 = vector.load %arg10[%c1_60, %c192_61] : memref<2x512xf32, #tpu.memory_space<vmem>>, vector<1x64xf32>
    tpu.vector_store %arg10[%c1_60, %c192_61], %73 {strides = array<i32>} : memref<2x512xf32, #tpu.memory_space<vmem>>, vector<1x64xf32>,
    %75 = vector.extract_strided_slice %50 {offsets = [12, 0], sizes = [1, 64], strides = [1, 1]} : vector<16x64xf32> to vector<1x64xf32>
    %c1_62 = arith.constant 1 : index
    %c256_63 = arith.constant 256 : index
    %76 = vector.load %arg10[%c1_62, %c256_63] : memref<2x512xf32, #tpu.memory_space<vmem>>, vector<1x64xf32>
    tpu.vector_store %arg10[%c1_62, %c256_63], %75 {strides = array<i32>} : memref<2x512xf32, #tpu.memory_space<vmem>>, vector<1x64xf32>,
    %77 = vector.extract_strided_slice %50 {offsets = [13, 0], sizes = [1, 64], strides = [1, 1]} : vector<16x64xf32> to vector<1x64xf32>
    %c1_64 = arith.constant 1 : index
    %c320_65 = arith.constant 320 : index
    %78 = vector.load %arg10[%c1_64, %c320_65] : memref<2x512xf32, #tpu.memory_space<vmem>>, vector<1x64xf32>
    tpu.vector_store %arg10[%c1_64, %c320_65], %77 {strides = array<i32>} : memref<2x512xf32, #tpu.memory_space<vmem>>, vector<1x64xf32>,
    %79 = vector.extract_strided_slice %50 {offsets = [14, 0], sizes = [1, 64], strides = [1, 1]} : vector<16x64xf32> to vector<1x64xf32>
    %c1_66 = arith.constant 1 : index
    %c384_67 = arith.constant 384 : index
    %80 = vector.load %arg10[%c1_66, %c384_67] : memref<2x512xf32, #tpu.memory_space<vmem>>, vector<1x64xf32>
    tpu.vector_store %arg10[%c1_66, %c384_67], %79 {strides = array<i32>} : memref<2x512xf32, #tpu.memory_space<vmem>>, vector<1x64xf32>,
    %81 = vector.extract_strided_slice %50 {offsets = [15, 0], sizes = [1, 64], strides = [1, 1]} : vector<16x64xf32> to vector<1x64xf32>
    %c1_68 = arith.constant 1 : index
    %c448_69 = arith.constant 448 : index
    %82 = vector.load %arg10[%c1_68, %c448_69] : memref<2x512xf32, #tpu.memory_space<vmem>>, vector<1x64xf32>
    tpu.vector_store %arg10[%c1_68, %c448_69], %81 {strides = array<i32>} : memref<2x512xf32, #tpu.memory_space<vmem>>, vector<1x64xf32>,
    %c0_70 = arith.constant 0 : index
    %c0_71 = arith.constant 0 : index
    %83 = vector.load %arg10[%c0_70, %c0_71] : memref<2x512xf32, #tpu.memory_space<vmem>>, vector<2x512xf32>
    %84 = arith.truncf %83 : vector<2x512xf32> to vector<2x512xbf16>
    %c0_72 = arith.constant 0 : index
    %c0_73 = arith.constant 0 : index
    %85 = vector.load %arg6[%c0_72, %c0_73] : memref<512x128xbf16, #tpu.memory_space<vmem>>, vector<512x128xbf16>
    %cst_74 = arith.constant dense<0.000000e+00> : vector<2x128xf32>
    %86 = tpu.matmul %84, %85, %cst_74 {dimension_numbers = #tpu.dot_dimension_numbers<[1], [0], [0], [1], [0, 0, 1, 1], [], []>} : vector<2x512xbf16>, vector<512x128xbf16>, vector<2x128xf32> -> vector<2x128xf32>
    %c0_75 = arith.constant 0 : index
    %c0_76 = arith.constant 0 : index
    %87 = vector.load %arg7[%c0_75, %c0_76] : memref<1x128xf32, #tpu.memory_space<vmem>>, vector<1x128xf32>
    %88 = vector.broadcast %87 : vector<1x128xf32> to vector<2x128xf32>
    %89 = arith.addf %86, %88 : vector<2x128xf32>
    %c0_77 = arith.constant 0 : index
    %c0_78 = arith.constant 0 : index
    %90 = vector.load %arg8[%c0_77, %c0_78] : memref<2x128xf32, #tpu.memory_space<vmem>>, vector<2x128xf32>
    tpu.vector_store %arg8[%c0_77, %c0_78], %89 {strides = array<i32>} : memref<2x128xf32, #tpu.memory_space<vmem>>, vector<2x128xf32>,
    return
  }
  func.func @transform_0(%arg0: i32) -> (i32, i32, i32) {
    %c0_i32 = arith.constant 0 : i32
    %c0_i32_0 = arith.constant 0 : i32
    %c0_i32_1 = arith.constant 0 : i32
    return %arg0, %c0_i32, %c0_i32_0 : i32, i32, i32
  }
  func.func @transform_1(%arg0: i32) -> (i32, i32, i32) {
    %c0_i32 = arith.constant 0 : i32
    %c0_i32_0 = arith.constant 0 : i32
    %c0_i32_1 = arith.constant 0 : i32
    %c0_i32_2 = arith.constant 0 : i32
    return %c0_i32, %c0_i32_0, %c0_i32_1 : i32, i32, i32
  }
  func.func @transform_2(%arg0: i32) -> (i32, i32) {
    %c0_i32 = arith.constant 0 : i32
    %c0_i32_0 = arith.constant 0 : i32
    %c0_i32_1 = arith.constant 0 : i32
    return %c0_i32, %c0_i32_0 : i32, i32
  }
  func.func @transform_3(%arg0: i32) -> (i32, i32, i32) {
    %c0_i32 = arith.constant 0 : i32
    %c0_i32_0 = arith.constant 0 : i32
    %c0_i32_1 = arith.constant 0 : i32
    %c0_i32_2 = arith.constant 0 : i32
    return %c0_i32, %c0_i32_0, %c0_i32_1 : i32, i32, i32
  }
  func.func @transform_4(%arg0: i32) -> (i32, i32) {
    %c0_i32 = arith.constant 0 : i32
    %c0_i32_0 = arith.constant 0 : i32
    %c0_i32_1 = arith.constant 0 : i32
    return %c0_i32, %c0_i32_0 : i32, i32
  }
  func.func @transform_5(%arg0: i32) -> (i32, i32) {
    %c0_i32 = arith.constant 0 : i32
    %c0_i32_0 = arith.constant 0 : i32
    %c0_i32_1 = arith.constant 0 : i32
    return %c0_i32, %c0_i32_0 : i32, i32
  }
  func.func @transform_6(%arg0: i32) -> (i32, i32) {
    %c0_i32 = arith.constant 0 : i32
    %c0_i32_0 = arith.constant 0 : i32
    %c0_i32_1 = arith.constant 0 : i32
    return %c0_i32, %c0_i32_0 : i32, i32
  }
  func.func @transform_7(%arg0: i32) -> (i32, i32) {
    %c0_i32 = arith.constant 0 : i32
    %c0_i32_0 = arith.constant 0 : i32
    return %arg0, %c0_i32 : i32, i32
  }
}

</mosaic_0001>

<llo_original>
// kernel: convnet_forward.1
$region0: #{convnet_forward.1}
  #allocation0 [shape = 'u32[]', space=smem, size = 0x4, offset = 0x4, fixed_abs, tag = 'smem constant byte address 0x4 - core index']
  #allocation1 [shape = 'u32[144,128]{1,0:T(1,128)}', space=vmem, size = 0x12000, scoped, tag = 'internal scratch']
  #allocation2 [shape = 'f32[2,9,288]{2,1,0:T(8,128)}', space=vmem, size = 0xc000, scoped, tag = 'scratch operand']
  #allocation3 [shape = 'f32[2,512]{1,0:T(2,128)}', space=vmem, size = 0x1000, scoped, tag = 'scratch operand']
  %s0 = inlined_call_operand.vmem [shape: f32[2,9,144], index: 0, kind: input, shape index: {}]
  %s1 = inlined_call_operand.vmem [shape: bf16[2,144,256], index: 1, kind: input, shape index: {}]
  %s2 = inlined_call_operand.vmem [shape: f32[1,256], index: 2, kind: input, shape index: {}]
  %s3 = inlined_call_operand.vmem [shape: bf16[2,288,64], index: 3, kind: input, shape index: {}]
  %s4 = inlined_call_operand.vmem [shape: f32[1,64], index: 4, kind: input, shape index: {}]
  %s5 = inlined_call_operand.vmem [shape: bf16[512,128], index: 5, kind: input, shape index: {}]
  %s6 = inlined_call_operand.vmem [shape: f32[1,128], index: 6, kind: input, shape index: {}]
  %s7 = inlined_call_operand.hbm [shape: f32[2,128], index: 7, kind: output, shape index: {}]
  %s8 = sld [smem:[#allocation0]]
  $region38: #{convnet_forward.1} parent=0
    _
  %s10 = ssub.s32 1, %s8
  %s11 = scalar_select 0, %s10, %s8
  $region1: #{convnet_forward.1} parent=0
    #allocation4 [shape = 'u8[1024]{0}', space=vmem, size = 0x400, scoped, tag = 'output window, operand 0, single buffered']
    #allocation5 [shape = 's32[1]{0}', space=sflag, size = 0x4, scoped, tag = 'scoped memory for convnet_forward.1']
    %12 = vsyncpa [#allocation5], 0
    // Predicated region
    $region2: #{convnet_forward.1} parent=1 // pred_check
      _
    $region3: #{convnet_forward.1} parent=1 // pred_check_branch
      %14 = sbr.rel (0) target = $region5
    $region4: #{convnet_forward.1} parent=1 // pred_region
      _
    $region5: #{convnet_forward.1} parent=1 // pred_fallthru
      _
    // Predicated region
    $region6: #{convnet_forward.1} parent=1 // pred_check
      _
    $region7: #{convnet_forward.1} parent=1 // pred_check_branch
      %16 = sbr.rel (0) target = $region9
    $region8: #{convnet_forward.1} parent=1 // pred_region
      _
    $region9: #{convnet_forward.1} parent=1 // pred_fallthru
      _
    // Predicated region
    $region10: #{convnet_forward.1} parent=1 // pred_check
      _
    $region11: #{convnet_forward.1} parent=1 // pred_check_branch
      %18 = sbr.rel (0) target = $region13
    $region12: #{convnet_forward.1} parent=1 // pred_region
      _
    $region13: #{convnet_forward.1} parent=1 // pred_fallthru
      _
    // Predicated region
    $region14: #{convnet_forward.1} parent=1 // pred_check
      _
    $region15: #{convnet_forward.1} parent=1 // pred_check_branch
      %20 = sbr.rel (0) target = $region17
    $region16: #{convnet_forward.1} parent=1 // pred_region
      _
    $region17: #{convnet_forward.1} parent=1 // pred_fallthru
      _
    // Predicated region
    $region18: #{convnet_forward.1} parent=1 // pred_check
      _
    $region19: #{convnet_forward.1} parent=1 // pred_check_branch
      %22 = sbr.rel (0) target = $region21
    $region20: #{convnet_forward.1} parent=1 // pred_region
      _
    $region21: #{convnet_forward.1} parent=1 // pred_fallthru
      _
    // Predicated region
    $region22: #{convnet_forward.1} parent=1 // pred_check
      _
    $region23: #{convnet_forward.1} parent=1 // pred_check_branch
      %24 = sbr.rel (0) target = $region25
    $region24: #{convnet_forward.1} parent=1 // pred_region
      _
    $region25: #{convnet_forward.1} parent=1 // pred_fallthru
      _
    // Predicated region
    $region26: #{convnet_forward.1} parent=1 // pred_check
      _
    $region27: #{convnet_forward.1} parent=1 // pred_check_branch
      %26 = sbr.rel (0) target = $region29
    $region28: #{convnet_forward.1} parent=1 // pred_region
      _
    $region29: #{convnet_forward.1} parent=1 // pred_fallthru
      _
    %v28 = vld [vmem:[%s0] sm:$0xff]
    %v29 = vld [vmem:[%s0 + $0x8] sm:$0xff]
    %v30 = vld [vmem:[%s0 + $0x20] sm:$0xff]
    %v31 = vld [vmem:[%s0 + $0x28] sm:$0xff]
    %v32 = vpack.c.bf16 %v30, %v28
    %v33 = vpack.c.bf16 %v31, %v29
    %v34 = vld [vmem:[%s1] sm:$0xff]
    %v35 = vld [vmem:[%s1 + $0x8] sm:$0xff]
    %v36 = vld [vmem:[%s1 + $0x10] sm:$0xff]
    %v37 = vld [vmem:[%s1 + $0x18] sm:$0xff]
    %v38 = vld [vmem:[%s1 + $0x20] sm:$0xff]
    %v39 = vld [vmem:[%s1 + $0x28] sm:$0xff]
    %v40 = vld [vmem:[%s1 + $0x30] sm:$0xff]
    %v41 = vld [vmem:[%s1 + $0x38] sm:$0xff]
    %v42 = vld [vmem:[%s1 + $0x40] sm:$0xff]
    %v43 = vld [vmem:[%s1 + $0x48] sm:$0xff]
    %v44 = vld [vmem:[%s1 + $0x50] sm:$0xff]
    %v45 = vld [vmem:[%s1 + $0x58] sm:$0xff]
    %v46 = vld [vmem:[%s1 + $0x60] sm:$0xff]
    %v47 = vld [vmem:[%s1 + $0x68] sm:$0xff]
    %v48 = vld [vmem:[%s1 + $0x70] sm:$0xff]
    %v49 = vld [vmem:[%s1 + $0x78] sm:$0xff]
    %v50 = vld [vmem:[%s1 + $0x80] sm:$0xff]
    %v51 = vld [vmem:[%s1 + $0x88] sm:$0xff]
    %v52 = vld [vmem:[%s0] sm:$0xfe]
    %v53 = vld [vmem:[%s0 + $0x8] sm:$0xfe]
    %v54 = vld [vmem:[%s0 + $0x10] sm:$0x1]
    %v55 = vld [vmem:[%s0 + $0x18] sm:$0x1]
    %v56 = vld [vmem:[%s0 + $0x20] sm:$0xfe]
    %v57 = vld [vmem:[%s0 + $0x28] sm:$0xfe]
    %v58 = vld [vmem:[%s0 + $0x30] sm:$0x1]
    %v59 = vld [vmem:[%s0 + $0x38] sm:$0x1]
    %vm68 = vcmask 1046528
    %v69 = vrot.slane %v52, 1
    %v70 = vrot.slane %v54, 1
    %v71 = vsel %vm68, %v69, %v70
    %v72 = vrot.slane %v53, 1
    %v73 = vrot.slane %v55, 1
    %v74 = vsel %vm68, %v72, %v73
    %v75 = vrot.slane %v56, 1
    %v76 = vrot.slane %v58, 1
    %v77 = vsel %vm68, %v75, %v76
    %v78 = vrot.slane %v57, 1
    %v79 = vrot.slane %v59, 1
    %v80 = vsel %vm68, %v78, %v79
    %v85 = vpack.c.bf16 %v77, %v71
    %v86 = vpack.c.bf16 %v80, %v74
    %s87 = scalar_lea.vmem %s1, 144
    %v88 = vld [vmem:[%s87] sm:$0xff]
    %v89 = vld [vmem:[%s87 + $0x8] sm:$0xff]
    %v90 = vld [vmem:[%s87 + $0x10] sm:$0xff]
    %v91 = vld [vmem:[%s87 + $0x18] sm:$0xff]
    %v92 = vld [vmem:[%s87 + $0x20] sm:$0xff]
    %v93 = vld [vmem:[%s87 + $0x28] sm:$0xff]
    %v94 = vld [vmem:[%s87 + $0x30] sm:$0xff]
    %v95 = vld [vmem:[%s87 + $0x38] sm:$0xff]
    %v96 = vld [vmem:[%s87 + $0x40] sm:$0xff]
    %v97 = vld [vmem:[%s87 + $0x48] sm:$0xff]
    %v98 = vld [vmem:[%s87 + $0x50] sm:$0xff]
    %v99 = vld [vmem:[%s87 + $0x58] sm:$0xff]
    %v100 = vld [vmem:[%s87 + $0x60] sm:$0xff]
    %v101 = vld [vmem:[%s87 + $0x68] sm:$0xff]
    %v102 = vld [vmem:[%s87 + $0x70] sm:$0xff]
    %v103 = vld [vmem:[%s87 + $0x78] sm:$0xff]
    %v104 = vld [vmem:[%s87 + $0x80] sm:$0xff]
    %v105 = vld [vmem:[%s87 + $0x88] sm:$0xff]
    %v124 = vunpack.c.l.b16 %v88
    %v125 = vunpack.c.h.b16 %v88
    %v126 = vunpack.c.l.b16 %v89
    %v127 = vunpack.c.h.b16 %v89
    %v128 = vunpack.c.l.b16 %v90
    %v129 = vunpack.c.h.b16 %v90
    %v130 = vunpack.c.l.b16 %v91
    %v131 = vunpack.c.h.b16 %v91
    %v132 = vunpack.c.l.b16 %v92
    %v133 = vunpack.c.h.b16 %v92
    %v134 = vunpack.c.l.b16 %v93
    %v135 = vunpack.c.h.b16 %v93
    %v136 = vunpack.c.l.b16 %v94
    %v137 = vunpack.c.h.b16 %v94
    %v138 = vunpack.c.l.b16 %v95
    %v139 = vunpack.c.h.b16 %v95
    %v140 = vunpack.c.l.b16 %v96
    %v141 = vunpack.c.h.b16 %v96
    %v142 = vunpack.c.l.b16 %v97
    %v143 = vunpack.c.h.b16 %v97
    %v144 = vunpack.c.l.b16 %v98
    %v145 = vunpack.c.h.b16 %v98
    %v146 = vunpack.c.l.b16 %v99
    %v147 = vunpack.c.h.b16 %v99
    %v148 = vunpack.c.l.b16 %v100
    %v149 = vunpack.c.h.b16 %v100
    %v150 = vunpack.c.l.b16 %v101
    %v151 = vunpack.c.h.b16 %v101
    %v152 = vunpack.c.l.b16 %v102
    %v153 = vunpack.c.h.b16 %v102
    %v154 = vunpack.c.l.b16 %v103
    %v155 = vunpack.c.h.b16 %v103
    %v156 = vunpack.c.l.b16 %v104
    %v157 = vunpack.c.h.b16 %v104
    %v158 = vunpack.c.l.b16 %v105
    %v159 = vunpack.c.h.b16 %v105
    %v160 = vpack.c.b16 %v126, %v124
    %v161 = vpack.c.b16 %v127, %v125
    %v162 = vpack.c.b16 %v130, %v128
    %v163 = vpack.c.b16 %v131, %v129
    %v164 = vpack.c.b16 %v134, %v132
    %v165 = vpack.c.b16 %v135, %v133
    %v166 = vpack.c.b16 %v138, %v136
    %v167 = vpack.c.b16 %v139, %v137
    %v168 = vpack.c.b16 %v142, %v140
    %v169 = vpack.c.b16 %v143, %v141
    %v170 = vpack.c.b16 %v146, %v144
    %v171 = vpack.c.b16 %v147, %v145
    %v172 = vpack.c.b16 %v150, %v148
    %v173 = vpack.c.b16 %v151, %v149
    %v174 = vpack.c.b16 %v154, %v152
    %v175 = vpack.c.b16 %v155, %v153
    %v176 = vpack.c.b16 %v158, %v156
    %v177 = vpack.c.b16 %v159, %v157
    %vm196 = vcmask 130048
    %v198 = vsel %vm196, %v86, 0
    %200 = vmatprep.subr.bf16.mxu0 %v175
    %201 = vmatpush1.bf16.msra.mxu0 %v174
    %202 = vmatprep.subr.bf16.mxu0 %v173
    %203 = vmatpush1.bf16.msra.mxu0 %v172
    %204 = vmatprep.subr.bf16.mxu0 %v171
    %205 = vmatpush1.bf16.msra.mxu0 %v170
    %206 = vmatprep.subr.bf16.mxu0 %v169
    %207 = vmatpush1.bf16.msra.mxu0 %v168
    %208 = vmatprep.subr.bf16.mxu0 %v167
    %209 = vmatpush1.bf16.msra.mxu0 %v166
    %210 = vmatprep.subr.bf16.mxu0 %v165
    %211 = vmatpush1.bf16.msra.mxu0 %v164
    %212 = vmatprep.subr.bf16.mxu0 %v163
    %213 = vmatpush1.bf16.msra.mxu0 %v162
    %214 = vmatprep.subr.bf16.mxu0 %v161
    %215 = vmatpush1.bf16.msra.mxu0 %v160
    %216 = vmatprep.subr.bf16.mxu0 0
    %217 = vmatpush2.bf16.msra.mxu0 0
    %218 = vmatprep.subr.bf16.mxu0 0
    %219 = vmatpush2.bf16.msra.mxu0 0
    %220 = vmatprep.subr.bf16.mxu0 0
    %221 = vmatpush2.bf16.msra.mxu0 0
    %222 = vmatprep.subr.bf16.mxu0 0
    %223 = vmatpush2.bf16.msra.mxu0 0
    %224 = vmatprep.subr.bf16.mxu0 0
    %225 = vmatpush2.bf16.msra.mxu0 0
    %226 = vmatprep.subr.bf16.mxu0 0
    %227 = vmatpush2.bf16.msra.mxu0 0
    %228 = vmatprep.subr.bf16.mxu0 0
    %229 = vmatpush2.bf16.msra.mxu0 0
    %230 = vmatprep.subr.bf16.mxu0 %v177
    %231 = vmatpush2.bf16.msra.mxu0 %v176
    %232 = vmatprep.mubr.bf16.mxu0 %v198
    %233 = vmatmul.mubr.bf16.gmra.mxu0 %v85
    %v234 = vpop.f32.mrf.mxu0
    %v235 = vadd.f32 0.0, %v234
    %v236 = vpop.f32.mrf.mxu0
    %v237 = vadd.f32 0.0, %v236
    %v238 = vpop.f32.mrf.mxu0
    %v239 = vadd.f32 0.0, %v238
    %v240 = vpop.f32.mrf.mxu0
    %v241 = vadd.f32 0.0, %v240
    %242 = vdwg.mxu0
    %v261 = vunpack.c.l.b16 %v34
    %v262 = vunpack.c.h.b16 %v34
    %v263 = vunpack.c.l.b16 %v35
    %v264 = vunpack.c.h.b16 %v35
    %v265 = vunpack.c.l.b16 %v36
    %v266 = vunpack.c.h.b16 %v36
    %v267 = vunpack.c.l.b16 %v37
    %v268 = vunpack.c.h.b16 %v37
    %v269 = vunpack.c.l.b16 %v38
    %v270 = vunpack.c.h.b16 %v38
    %v271 = vunpack.c.l.b16 %v39
    %v272 = vunpack.c.h.b16 %v39
    %v273 = vunpack.c.l.b16 %v40
    %v274 = vunpack.c.h.b16 %v40
    %v275 = vunpack.c.l.b16 %v41
    %v276 = vunpack.c.h.b16 %v41
    %v277 = vunpack.c.l.b16 %v42
    %v278 = vunpack.c.h.b16 %v42
    %v279 = vunpack.c.l.b16 %v43
    %v280 = vunpack.c.h.b16 %v43
    %v281 = vunpack.c.l.b16 %v44
    %v282 = vunpack.c.h.b16 %v44
    %v283 = vunpack.c.l.b16 %v45
    %v284 = vunpack.c.h.b16 %v45
    %v285 = vunpack.c.l.b16 %v46
    %v286 = vunpack.c.h.b16 %v46
    %v287 = vunpack.c.l.b16 %v47
    %v288 = vunpack.c.h.b16 %v47
    %v289 = vunpack.c.l.b16 %v48
    %v290 = vunpack.c.h.b16 %v48
    %v291 = vunpack.c.l.b16 %v49
    %v292 = vunpack.c.h.b16 %v49
    %v293 = vunpack.c.l.b16 %v50
    %v294 = vunpack.c.h.b16 %v50
    %v295 = vunpack.c.l.b16 %v51
    %v296 = vunpack.c.h.b16 %v51
    %v297 = vpack.c.b16 %v263, %v261
    %v298 = vpack.c.b16 %v264, %v262
    %v299 = vpack.c.b16 %v267, %v265
    %v300 = vpack.c.b16 %v268, %v266
    %v301 = vpack.c.b16 %v271, %v269
    %v302 = vpack.c.b16 %v272, %v270
    %v303 = vpack.c.b16 %v275, %v273
    %v304 = vpack.c.b16 %v276, %v274
    %v305 = vpack.c.b16 %v279, %v277
    %v306 = vpack.c.b16 %v280, %v278
    %v307 = vpack.c.b16 %v283, %v281
    %v308 = vpack.c.b16 %v284, %v282
    %v309 = vpack.c.b16 %v287, %v285
    %v310 = vpack.c.b16 %v288, %v286
    %v311 = vpack.c.b16 %v291, %v289
    %v312 = vpack.c.b16 %v292, %v290
    %v313 = vpack.c.b16 %v295, %v293
    %v314 = vpack.c.b16 %v296, %v294
    %v334 = vsel %vm196, %v33, 0
    %336 = vmatprep.subr.bf16.mxu0 %v312
    %337 = vmatpush1.bf16.msra.mxu0 %v311
    %338 = vmatprep.subr.bf16.mxu0 %v310
    %339 = vmatpush1.bf16.msra.mxu0 %v309
    %340 = vmatprep.subr.bf16.mxu0 %v308
    %341 = vmatpush1.bf16.msra.mxu0 %v307
    %342 = vmatprep.subr.bf16.mxu0 %v306
    %343 = vmatpush1.bf16.msra.mxu0 %v305
    %344 = vmatprep.subr.bf16.mxu0 %v304
    %345 = vmatpush1.bf16.msra.mxu0 %v303
    %346 = vmatprep.subr.bf16.mxu0 %v302
    %347 = vmatpush1.bf16.msra.mxu0 %v301
    %348 = vmatprep.subr.bf16.mxu0 %v300
    %349 = vmatpush1.bf16.msra.mxu0 %v299
    %350 = vmatprep.subr.bf16.mxu0 %v298
    %351 = vmatpush1.bf16.msra.mxu0 %v297
    %352 = vmatprep.subr.bf16.mxu0 0
    %353 = vmatpush2.bf16.msra.mxu0 0
    %354 = vmatprep.subr.bf16.mxu0 0
    %355 = vmatpush2.bf16.msra.mxu0 0
    %356 = vmatprep.subr.bf16.mxu0 0
    %357 = vmatpush2.bf16.msra.mxu0 0
    %358 = vmatprep.subr.bf16.mxu0 0
    %359 = vmatpush2.bf16.msra.mxu0 0
    %360 = vmatprep.subr.bf16.mxu0 0
    %361 = vmatpush2.bf16.msra.mxu0 0
    %362 = vmatprep.subr.bf16.mxu0 0
    %363 = vmatpush2.bf16.msra.mxu0 0
    %364 = vmatprep.subr.bf16.mxu0 0
    %365 = vmatpush2.bf16.msra.mxu0 0
    %366 = vmatprep.subr.bf16.mxu0 %v314
    %367 = vmatpush2.bf16.msra.mxu0 %v313
    %368 = vmatprep.mubr.bf16.mxu0 %v334
    %369 = vmatmul.mubr.bf16.gmra.mxu0 %v32
    %v370 = vpop.f32.mrf.mxu0
    %v371 = vadd.f32 %v235, %v370
    %v372 = vpop.f32.mrf.mxu0
    %v373 = vadd.f32 %v237, %v372
    %v374 = vpop.f32.mrf.mxu0
    %v375 = vadd.f32 %v239, %v374
    %v376 = vpop.f32.mrf.mxu0
    %v377 = vadd.f32 %v241, %v376
    %378 = vdwg.mxu0
    %v379 = vld [vmem:[%s2] sm:$0x3]
    %v381 = vlaneseq
    %v382 = vshrl.u32 %v381, 7
    %v383 = vsub.s32 0, %v382
    %v384 = vrot.slane %v379, %v383
    %v385 = vlaneseq
    %v386 = vshrl.u32 %v385, 7
    %v387 = vsub.s32 1, %v386
    %v388 = vrot.slane %v379, %v387
    %v391 = vadd.f32 %v371, %v384
    %v392 = vadd.f32 %v373, %v388
    %v393 = vadd.f32 %v375, %v384
    %v394 = vadd.f32 %v377, %v388
    %v395 = vmax.f32 %v391, 0.0
    %v396 = vmax.f32 %v392, 0.0
    %v397 = vmax.f32 %v393, 0.0
    %v398 = vmax.f32 %v394, 0.0
    %399 = vst [vmem:[#allocation2] sm:$0xff] 0.0
    %400 = vst [vmem:[#allocation2 + $0x8] sm:$0xff] 0.0
    %vm401 = vcmask 261120
    %402 = vst.msk [vmem:[#allocation2 + $0x10] sm:$0xff] %vm401, 0.0
    %403 = vst [vmem:[#allocation2 + $0x18] sm:$0x1] 0.0
    %404 = vst [vmem:[#allocation2 + $0x20] sm:$0x1] 0.0
    %vm405 = vcmask 253952
    %406 = vst.msk [vmem:[#allocation2 + $0x28] sm:$0x1] %vm405, 0.0
    %407 = vst [vmem:[#allocation2 + $0x30] sm:$0xff] 0.0
    %408 = vst [vmem:[#allocation2 + $0x38] sm:$0xff] 0.0
    %409 = vst.msk [vmem:[#allocation2 + $0x40] sm:$0xff] %vm401, 0.0
    %410 = vst [vmem:[#allocation2 + $0x48] sm:$0x1] 0.0
    %411 = vst [vmem:[#allocation2 + $0x50] sm:$0x1] 0.0
    %412 = vst.msk [vmem:[#allocation2 + $0x58] sm:$0x1] %vm405, 0.0
    %415 = vrot.lane.b32.xlu0 %v395, 88
    %v416 = vpop.permute.xlu0 %415
    %417 = vrot.lane.b32.xlu0 %v397, 88
    %v418 = vpop.permute.xlu0 %417
    %vm421 = vcmask 1048256
    %422 = vst.msk [vmem:[#allocation2 + $0x8] sm:$0xff] %vm421, %v416
    %vm423 = vcmask 195584
    %424 = vst.msk [vmem:[#allocation2 + $0x10] sm:$0xff] %vm423, %v416
    %425 = vst.msk [vmem:[#allocation2 + $0x38] sm:$0xff] %vm421, %v418
    %426 = vst.msk [vmem:[#allocation2 + $0x40] sm:$0xff] %vm423, %v418
    %vm427 = vcmask 720064
    %428 = vst.msk [vmem:[#allocation2 + $0x8] sm:$0xff] %vm427, %v416
    %429 = vst.msk [vmem:[#allocation2 + $0x38] sm:$0xff] %vm427, %v418
    %v432 = vrot.slane %v396, 7
    %v433 = vrot.slane %v398, 7
    %434 = vrot.lane.b32.xlu0 %v432, 72
    %v435 = vpop.permute.xlu0 %434
    %436 = vrot.lane.b32.xlu0 %v433, 72
    %v437 = vpop.permute.xlu0 %436
    %vm440 = vcmask 1048129
    %441 = vst.msk [vmem:[#allocation2] sm:$0xfe] %vm440, %v435
    %vm442 = vcmask 64513
    %443 = vst.msk [vmem:[#allocation2 + $0x8] sm:$0xfe] %vm442, %v435
    %vm444 = vcmask 1040960
    %445 = vst.msk [vmem:[#allocation2 + $0x18] sm:$0x1] %vm444, %v435
    %vm446 = vcmask 57344
    %447 = vst.msk [vmem:[#allocation2 + $0x20] sm:$0x1] %vm446, %v435
    %448 = vst.msk [vmem:[#allocation2 + $0x30] sm:$0xfe] %vm440, %v437
    %449 = vst.msk [vmem:[#allocation2 + $0x38] sm:$0xfe] %vm442, %v437
    %450 = vst.msk [vmem:[#allocation2 + $0x48] sm:$0x1] %vm444, %v437
    %451 = vst.msk [vmem:[#allocation2 + $0x50] sm:$0x1] %vm446, %v437
    %vm452 = vcmask 588865
    %453 = vst.msk [vmem:[#allocation2] sm:$0xfe] %vm452, %v435
    %vm454 = vcmask 581696
    %455 = vst.msk [vmem:[#allocation2 + $0x18] sm:$0x1] %vm454, %v435
    %456 = vst.msk [vmem:[#allocation2 + $0x30] sm:$0xfe] %vm452, %v437
    %457 = vst.msk [vmem:[#allocation2 + $0x48] sm:$0x1] %vm454, %v437
    %v458 = vld [vmem:[#allocation2] sm:$0xff]
    %v459 = vld [vmem:[#allocation2 + $0x8] sm:$0xff]
    %v460 = vld [vmem:[#allocation2 + $0x10] sm:$0xff]
    %v461 = vld [vmem:[#allocation2 + $0x30] sm:$0xff]
    %v462 = vld [vmem:[#allocation2 + $0x38] sm:$0xff]
    %v463 = vld [vmem:[#allocation2 + $0x40] sm:$0xff]
    %v464 = vpack.c.bf16 %v461, %v458
    %v465 = vpack.c.bf16 %v462, %v459
    %v466 = vpack.c.bf16 %v463, %v460
    %v467 = vld [vmem:[%s3] sm:$0xf]
    %v468 = vld [vmem:[%s3 + $0x4] sm:$0xf]
    %v469 = vld [vmem:[%s3 + $0x8] sm:$0xf]
    %v470 = vld [vmem:[%s3 + $0xc] sm:$0xf]
    %v471 = vld [vmem:[%s3 + $0x10] sm:$0xf]
    %v472 = vld [vmem:[%s3 + $0x14] sm:$0xf]
    %v473 = vld [vmem:[%s3 + $0x18] sm:$0xf]
    %v474 = vld [vmem:[%s3 + $0x1c] sm:$0xf]
    %v475 = vld [vmem:[%s3 + $0x20] sm:$0xf]
    %v476 = vld [vmem:[%s3 + $0x24] sm:$0xf]
    %v477 = vld [vmem:[%s3 + $0x28] sm:$0xf]
    %v478 = vld [vmem:[%s3 + $0x2c] sm:$0xf]
    %v479 = vld [vmem:[%s3 + $0x30] sm:$0xf]
    %v480 = vld [vmem:[%s3 + $0x34] sm:$0xf]
    %v481 = vld [vmem:[%s3 + $0x38] sm:$0xf]
    %v482 = vld [vmem:[%s3 + $0x3c] sm:$0xf]
    %v483 = vld [vmem:[%s3 + $0x40] sm:$0xf]
    %v484 = vld [vmem:[%s3 + $0x44] sm:$0xf]
    %v485 = vld [vmem:[%s3 + $0x48] sm:$0xf]
    %v486 = vld [vmem:[%s3 + $0x4c] sm:$0xf]
    %v487 = vld [vmem:[%s3 + $0x50] sm:$0xf]
    %v488 = vld [vmem:[%s3 + $0x54] sm:$0xf]
    %v489 = vld [vmem:[%s3 + $0x58] sm:$0xf]
    %v490 = vld [vmem:[%s3 + $0x5c] sm:$0xf]
    %v491 = vld [vmem:[%s3 + $0x60] sm:$0xf]
    %v492 = vld [vmem:[%s3 + $0x64] sm:$0xf]
    %v493 = vld [vmem:[%s3 + $0x68] sm:$0xf]
    %v494 = vld [vmem:[%s3 + $0x6c] sm:$0xf]
    %v495 = vld [vmem:[%s3 + $0x70] sm:$0xf]
    %v496 = vld [vmem:[%s3 + $0x74] sm:$0xf]
    %v497 = vld [vmem:[%s3 + $0x78] sm:$0xf]
    %v498 = vld [vmem:[%s3 + $0x7c] sm:$0xf]
    %v499 = vld [vmem:[%s3 + $0x80] sm:$0xf]
    %v500 = vld [vmem:[%s3 + $0x84] sm:$0xf]
    %v501 = vld [vmem:[%s3 + $0x88] sm:$0xf]
    %v502 = vld [vmem:[%s3 + $0x8c] sm:$0xf]
    %v503 = vld [vmem:[#allocation2] sm:$0xfe]
    %v504 = vld [vmem:[#allocation2 + $0x8] sm:$0xfe]
    %v505 = vld [vmem:[#allocation2 + $0x10] sm:$0xfe]
    %v506 = vld [vmem:[#allocation2 + $0x18] sm:$0x1]
    %v507 = vld [vmem:[#allocation2 + $0x20] sm:$0x1]
    %v508 = vld [vmem:[#allocation2 + $0x28] sm:$0x1]
    %v509 = vld [vmem:[#allocation2 + $0x30] sm:$0xfe]
    %v510 = vld [vmem:[#allocation2 + $0x38] sm:$0xfe]
    %v511 = vld [vmem:[#allocation2 + $0x40] sm:$0xfe]
    %v512 = vld [vmem:[#allocation2 + $0x48] sm:$0x1]
    %v513 = vld [vmem:[#allocation2 + $0x50] sm:$0x1]
    %v514 = vld [vmem:[#allocation2 + $0x58] sm:$0x1]
    %v527 = vrot.slane %v503, 1
    %v528 = vrot.slane %v506, 1
    %v529 = vsel %vm68, %v527, %v528
    %v530 = vrot.slane %v504, 1
    %v531 = vrot.slane %v507, 1
    %v532 = vsel %vm68, %v530, %v531
    %v533 = vrot.slane %v505, 1
    %v534 = vrot.slane %v508, 1
    %v535 = vsel %vm68, %v533, %v534
    %v536 = vrot.slane %v509, 1
    %v537 = vrot.slane %v512, 1
    %v538 = vsel %vm68, %v536, %v537
    %v539 = vrot.slane %v510, 1
    %v540 = vrot.slane %v513, 1
    %v541 = vsel %vm68, %v539, %v540
    %v542 = vrot.slane %v511, 1
    %v543 = vrot.slane %v514, 1
    %v544 = vsel %vm68, %v542, %v543
    %v551 = vpack.c.bf16 %v538, %v529
    %v552 = vpack.c.bf16 %v541, %v532
    %v553 = vpack.c.bf16 %v544, %v535
    %s554 = scalar_lea.vmem %s3, 144
    %v555 = vld [vmem:[%s554] sm:$0xf]
    %v556 = vld [vmem:[%s554 + $0x4] sm:$0xf]
    %v557 = vld [vmem:[%s554 + $0x8] sm:$0xf]
    %v558 = vld [vmem:[%s554 + $0xc] sm:$0xf]
    %v559 = vld [vmem:[%s554 + $0x10] sm:$0xf]
    %v560 = vld [vmem:[%s554 + $0x14] sm:$0xf]
    %v561 = vld [vmem:[%s554 + $0x18] sm:$0xf]
    %v562 = vld [vmem:[%s554 + $0x1c] sm:$0xf]
    %v563 = vld [vmem:[%s554 + $0x20] sm:$0xf]
    %v564 = vld [vmem:[%s554 + $0x24] sm:$0xf]
    %v565 = vld [vmem:[%s554 + $0x28] sm:$0xf]
    %v566 = vld [vmem:[%s554 + $0x2c] sm:$0xf]
    %v567 = vld [vmem:[%s554 + $0x30] sm:$0xf]
    %v568 = vld [vmem:[%s554 + $0x34] sm:$0xf]
    %v569 = vld [vmem:[%s554 + $0x38] sm:$0xf]
    %v570 = vld [vmem:[%s554 + $0x3c] sm:$0xf]
    %v571 = vld [vmem:[%s554 + $0x40] sm:$0xf]
    %v572 = vld [vmem:[%s554 + $0x44] sm:$0xf]
    %v573 = vld [vmem:[%s554 + $0x48] sm:$0xf]
    %v574 = vld [vmem:[%s554 + $0x4c] sm:$0xf]
    %v575 = vld [vmem:[%s554 + $0x50] sm:$0xf]
    %v576 = vld [vmem:[%s554 + $0x54] sm:$0xf]
    %v577 = vld [vmem:[%s554 + $0x58] sm:$0xf]
    %v578 = vld [vmem:[%s554 + $0x5c] sm:$0xf]
    %v579 = vld [vmem:[%s554 + $0x60] sm:$0xf]
    %v580 = vld [vmem:[%s554 + $0x64] sm:$0xf]
    %v581 = vld [vmem:[%s554 + $0x68] sm:$0xf]
    %v582 = vld [vmem:[%s554 + $0x6c] sm:$0xf]
    %v583 = vld [vmem:[%s554 + $0x70] sm:$0xf]
    %v584 = vld [vmem:[%s554 + $0x74] sm:$0xf]
    %v585 = vld [vmem:[%s554 + $0x78] sm:$0xf]
    %v586 = vld [vmem:[%s554 + $0x7c] sm:$0xf]
    %v587 = vld [vmem:[%s554 + $0x80] sm:$0xf]
    %v588 = vld [vmem:[%s554 + $0x84] sm:$0xf]
    %v589 = vld [vmem:[%s554 + $0x88] sm:$0xf]
    %v590 = vld [vmem:[%s554 + $0x8c] sm:$0xf]
    %v627 = vunpack.c.l.b16 %v555
    %v628 = vunpack.c.l.b16 %v556
    %v629 = vunpack.c.l.b16 %v557
    %v630 = vunpack.c.l.b16 %v558
    %v631 = vunpack.c.l.b16 %v559
    %v632 = vunpack.c.l.b16 %v560
    %v633 = vunpack.c.l.b16 %v561
    %v634 = vunpack.c.l.b16 %v562
    %v635 = vunpack.c.l.b16 %v563
    %v636 = vunpack.c.l.b16 %v564
    %v637 = vunpack.c.l.b16 %v565
    %v638 = vunpack.c.l.b16 %v566
    %v639 = vunpack.c.l.b16 %v567
    %v640 = vunpack.c.l.b16 %v568
    %v641 = vunpack.c.l.b16 %v569
    %v642 = vunpack.c.l.b16 %v570
    %v643 = vunpack.c.l.b16 %v571
    %v644 = vunpack.c.l.b16 %v572
    %v645 = vunpack.c.l.b16 %v573
    %v646 = vunpack.c.l.b16 %v574
    %v647 = vunpack.c.l.b16 %v575
    %v648 = vunpack.c.l.b16 %v576
    %v649 = vunpack.c.l.b16 %v577
    %v650 = vunpack.c.l.b16 %v578
    %v651 = vunpack.c.l.b16 %v579
    %v652 = vunpack.c.l.b16 %v580
    %v653 = vunpack.c.l.b16 %v581
    %v654 = vunpack.c.l.b16 %v582
    %v655 = vunpack.c.l.b16 %v583
    %v656 = vunpack.c.l.b16 %v584
    %v657 = vunpack.c.l.b16 %v585
    %v658 = vunpack.c.l.b16 %v586
    %v659 = vunpack.c.l.b16 %v587
    %v660 = vunpack.c.l.b16 %v588
    %v661 = vunpack.c.l.b16 %v589
    %v662 = vunpack.c.l.b16 %v590
    %v663 = vpack.c.b16 %v628, %v627
    %v664 = vpack.c.b16 %v630, %v629
    %v665 = vpack.c.b16 %v632, %v631
    %v666 = vpack.c.b16 %v634, %v633
    %v667 = vpack.c.b16 %v636, %v635
    %v668 = vpack.c.b16 %v638, %v637
    %v669 = vpack.c.b16 %v640, %v639
    %v670 = vpack.c.b16 %v642, %v641
    %v671 = vpack.c.b16 %v644, %v643
    %v672 = vpack.c.b16 %v646, %v645
    %v673 = vpack.c.b16 %v648, %v647
    %v674 = vpack.c.b16 %v650, %v649
    %v675 = vpack.c.b16 %v652, %v651
    %v676 = vpack.c.b16 %v654, %v653
    %v677 = vpack.c.b16 %v656, %v655
    %v678 = vpack.c.b16 %v658, %v657
    %v679 = vpack.c.b16 %v660, %v659
    %v680 = vpack.c.b16 %v662, %v661
    %v700 = vsel %vm401, %v553, 0
    %702 = vmatprep.subr.bf16.mxu0 0
    %703 = vmatpush1.bf16.msra.mxu0 %v670
    %704 = vmatprep.subr.bf16.mxu0 0
    %705 = vmatpush1.bf16.msra.mxu0 %v669
    %706 = vmatprep.subr.bf16.mxu0 0
    %707 = vmatpush1.bf16.msra.mxu0 %v668
    %708 = vmatprep.subr.bf16.mxu0 0
    %709 = vmatpush1.bf16.msra.mxu0 %v667
    %710 = vmatprep.subr.bf16.mxu0 0
    %711 = vmatpush1.bf16.msra.mxu0 %v666
    %712 = vmatprep.subr.bf16.mxu0 0
    %713 = vmatpush1.bf16.msra.mxu0 %v665
    %714 = vmatprep.subr.bf16.mxu0 0
    %715 = vmatpush1.bf16.msra.mxu0 %v664
    %716 = vmatprep.subr.bf16.mxu0 0
    %717 = vmatpush1.bf16.msra.mxu0 %v663
    %718 = vmatprep.subr.bf16.mxu0 0
    %719 = vmatpush2.bf16.msra.mxu0 %v678
    %720 = vmatprep.subr.bf16.mxu0 0
    %721 = vmatpush2.bf16.msra.mxu0 %v677
    %722 = vmatprep.subr.bf16.mxu0 0
    %723 = vmatpush2.bf16.msra.mxu0 %v676
    %724 = vmatprep.subr.bf16.mxu0 0
    %725 = vmatpush2.bf16.msra.mxu0 %v675
    %726 = vmatprep.subr.bf16.mxu0 0
    %727 = vmatpush2.bf16.msra.mxu0 %v674
    %728 = vmatprep.subr.bf16.mxu0 0
    %729 = vmatpush2.bf16.msra.mxu0 %v673
    %730 = vmatprep.subr.bf16.mxu0 0
    %731 = vmatpush2.bf16.msra.mxu0 %v672
    %732 = vmatprep.subr.bf16.mxu0 0
    %733 = vmatpush2.bf16.msra.mxu0 %v671
    %734 = vmatprep.mubr.bf16.mxu0 %v552
    %735 = vmatmul.mubr.bf16.gmra.mxu0 %v551
    %v736 = vpop.f32.mrf.mxu0
    %v737 = vadd.f32 0.0, %v736
    %v738 = vpop.f32.mrf.mxu0
    %v739 = vpop.f32.mrf.mxu0
    %v740 = vadd.f32 0.0, %v739
    %v741 = vpop.f32.mrf.mxu0
    %742 = vdwg.mxu0
    %743 = vmatprep.subr.bf16.mxu0 0
    %744 = vmatpush1.bf16.msra.mxu0 0
    %745 = vmatprep.subr.bf16.mxu0 0
    %746 = vmatpush1.bf16.msra.mxu0 0
    %747 = vmatprep.subr.bf16.mxu0 0
    %748 = vmatpush1.bf16.msra.mxu0 0
    %749 = vmatprep.subr.bf16.mxu0 0
    %750 = vmatpush1.bf16.msra.mxu0 0
    %751 = vmatprep.subr.bf16.mxu0 0
    %752 = vmatpush1.bf16.msra.mxu0 0
    %753 = vmatprep.subr.bf16.mxu0 0
    %754 = vmatpush1.bf16.msra.mxu0 0
    %755 = vmatprep.subr.bf16.mxu0 0
    %756 = vmatpush1.bf16.msra.mxu0 %v680
    %757 = vmatprep.subr.bf16.mxu0 0
    %758 = vmatpush1.bf16.msra.mxu0 %v679
    %759 = vmatprep.subr.bf16.mxu0 0
    %760 = vmatpush2.bf16.msra.mxu0 0
    %761 = vmatprep.subr.bf16.mxu0 0
    %762 = vmatpush2.bf16.msra.mxu0 0
    %763 = vmatprep.subr.bf16.mxu0 0
    %764 = vmatpush2.bf16.msra.mxu0 0
    %765 = vmatprep.subr.bf16.mxu0 0
    %766 = vmatpush2.bf16.msra.mxu0 0
    %767 = vmatprep.subr.bf16.mxu0 0
    %768 = vmatpush2.bf16.msra.mxu0 0
    %769 = vmatprep.subr.bf16.mxu0 0
    %770 = vmatpush2.bf16.msra.mxu0 0
    %771 = vmatprep.subr.bf16.mxu0 0
    %772 = vmatpush2.bf16.msra.mxu0 0
    %773 = vmatprep.subr.bf16.mxu0 0
    %774 = vmatpush2.bf16.msra.mxu0 0
    %775 = vmatprep.mubr.bf16.mxu0 0
    %776 = vmatmul.mubr.bf16.gmra.mxu0 %v700
    %v777 = vpop.f32.mrf.mxu0
    %v778 = vadd.f32 %v737, %v777
    %v779 = vpop.f32.mrf.mxu0
    %v780 = vpop.f32.mrf.mxu0
    %v781 = vadd.f32 %v740, %v780
    %v782 = vpop.f32.mrf.mxu0
    %783 = vdwg.mxu0
    %v820 = vunpack.c.l.b16 %v467
    %v821 = vunpack.c.l.b16 %v468
    %v822 = vunpack.c.l.b16 %v469
    %v823 = vunpack.c.l.b16 %v470
    %v824 = vunpack.c.l.b16 %v471
    %v825 = vunpack.c.l.b16 %v472
    %v826 = vunpack.c.l.b16 %v473
    %v827 = vunpack.c.l.b16 %v474
    %v828 = vunpack.c.l.b16 %v475
    %v829 = vunpack.c.l.b16 %v476
    %v830 = vunpack.c.l.b16 %v477
    %v831 = vunpack.c.l.b16 %v478
    %v832 = vunpack.c.l.b16 %v479
    %v833 = vunpack.c.l.b16 %v480
    %v834 = vunpack.c.l.b16 %v481
    %v835 = vunpack.c.l.b16 %v482
    %v836 = vunpack.c.l.b16 %v483
    %v837 = vunpack.c.l.b16 %v484
    %v838 = vunpack.c.l.b16 %v485
    %v839 = vunpack.c.l.b16 %v486
    %v840 = vunpack.c.l.b16 %v487
    %v841 = vunpack.c.l.b16 %v488
    %v842 = vunpack.c.l.b16 %v489
    %v843 = vunpack.c.l.b16 %v490
    %v844 = vunpack.c.l.b16 %v491
    %v845 = vunpack.c.l.b16 %v492
    %v846 = vunpack.c.l.b16 %v493
    %v847 = vunpack.c.l.b16 %v494
    %v848 = vunpack.c.l.b16 %v495
    %v849 = vunpack.c.l.b16 %v496
    %v850 = vunpack.c.l.b16 %v497
    %v851 = vunpack.c.l.b16 %v498
    %v852 = vunpack.c.l.b16 %v499
    %v853 = vunpack.c.l.b16 %v500
    %v854 = vunpack.c.l.b16 %v501
    %v855 = vunpack.c.l.b16 %v502
    %v856 = vpack.c.b16 %v821, %v820
    %v857 = vpack.c.b16 %v823, %v822
    %v858 = vpack.c.b16 %v825, %v824
    %v859 = vpack.c.b16 %v827, %v826
    %v860 = vpack.c.b16 %v829, %v828
    %v861 = vpack.c.b16 %v831, %v830
    %v862 = vpack.c.b16 %v833, %v832
    %v863 = vpack.c.b16 %v835, %v834
    %v864 = vpack.c.b16 %v837, %v836
    %v865 = vpack.c.b16 %v839, %v838
    %v866 = vpack.c.b16 %v841, %v840
    %v867 = vpack.c.b16 %v843, %v842
    %v868 = vpack.c.b16 %v845, %v844
    %v869 = vpack.c.b16 %v847, %v846
    %v870 = vpack.c.b16 %v849, %v848
    %v871 = vpack.c.b16 %v851, %v850
    %v872 = vpack.c.b16 %v853, %v852
    %v873 = vpack.c.b16 %v855, %v854
    %v893 = vsel %vm401, %v466, 0
    %895 = vmatprep.subr.bf16.mxu0 0
    %896 = vmatpush1.bf16.msra.mxu0 %v863
    %897 = vmatprep.subr.bf16.mxu0 0
    %898 = vmatpush1.bf16.msra.mxu0 %v862
    %899 = vmatprep.subr.bf16.mxu0 0
    %900 = vmatpush1.bf16.msra.mxu0 %v861
    %901 = vmatprep.subr.bf16.mxu0 0
    %902 = vmatpush1.bf16.msra.mxu0 %v860
    %903 = vmatprep.subr.bf16.mxu0 0
    %904 = vmatpush1.bf16.msra.mxu0 %v859
    %905 = vmatprep.subr.bf16.mxu0 0
    %906 = vmatpush1.bf16.msra.mxu0 %v858
    %907 = vmatprep.subr.bf16.mxu0 0
    %908 = vmatpush1.bf16.msra.mxu0 %v857
    %909 = vmatprep.subr.bf16.mxu0 0
    %910 = vmatpush1.bf16.msra.mxu0 %v856
    %911 = vmatprep.subr.bf16.mxu0 0
    %912 = vmatpush2.bf16.msra.mxu0 %v871
    %913 = vmatprep.subr.bf16.mxu0 0
    %914 = vmatpush2.bf16.msra.mxu0 %v870
    %915 = vmatprep.subr.bf16.mxu0 0
    %916 = vmatpush2.bf16.msra.mxu0 %v869
    %917 = vmatprep.subr.bf16.mxu0 0
    %918 = vmatpush2.bf16.msra.mxu0 %v868
    %919 = vmatprep.subr.bf16.mxu0 0
    %920 = vmatpush2.bf16.msra.mxu0 %v867
    %921 = vmatprep.subr.bf16.mxu0 0
    %922 = vmatpush2.bf16.msra.mxu0 %v866
    %923 = vmatprep.subr.bf16.mxu0 0
    %924 = vmatpush2.bf16.msra.mxu0 %v865
    %925 = vmatprep.subr.bf16.mxu0 0
    %926 = vmatpush2.bf16.msra.mxu0 %v864
    %927 = vmatprep.mubr.bf16.mxu0 %v465
    %928 = vmatmul.mubr.bf16.gmra.mxu0 %v464
    %v929 = vpop.f32.mrf.mxu0
    %v930 = vadd.f32 %v778, %v929
    %v931 = vpop.f32.mrf.mxu0
    %v932 = vpop.f32.mrf.mxu0
    %v933 = vadd.f32 %v781, %v932
    %v934 = vpop.f32.mrf.mxu0
    %935 = vdwg.mxu0
    %936 = vmatprep.subr.bf16.mxu0 0
    %937 = vmatpush1.bf16.msra.mxu0 0
    %938 = vmatprep.subr.bf16.mxu0 0
    %939 = vmatpush1.bf16.msra.mxu0 0
    %940 = vmatprep.subr.bf16.mxu0 0
    %941 = vmatpush1.bf16.msra.mxu0 0
    %942 = vmatprep.subr.bf16.mxu0 0
    %943 = vmatpush1.bf16.msra.mxu0 0
    %944 = vmatprep.subr.bf16.mxu0 0
    %945 = vmatpush1.bf16.msra.mxu0 0
    %946 = vmatprep.subr.bf16.mxu0 0
    %947 = vmatpush1.bf16.msra.mxu0 0
    %948 = vmatprep.subr.bf16.mxu0 0
    %949 = vmatpush1.bf16.msra.mxu0 %v873
    %950 = vmatprep.subr.bf16.mxu0 0
    %951 = vmatpush1.bf16.msra.mxu0 %v872
    %952 = vmatprep.subr.bf16.mxu0 0
    %953 = vmatpush2.bf16.msra.mxu0 0
    %954 = vmatprep.subr.bf16.mxu0 0
    %955 = vmatpush2.bf16.msra.mxu0 0
    %956 = vmatprep.subr.bf16.mxu0 0
    %957 = vmatpush2.bf16.msra.mxu0 0
    %958 = vmatprep.subr.bf16.mxu0 0
    %959 = vmatpush2.bf16.msra.mxu0 0
    %960 = vmatprep.subr.bf16.mxu0 0
    %961 = vmatpush2.bf16.msra.mxu0 0
    %962 = vmatprep.subr.bf16.mxu0 0
    %963 = vmatpush2.bf16.msra.mxu0 0
    %964 = vmatprep.subr.bf16.mxu0 0
    %965 = vmatpush2.bf16.msra.mxu0 0
    %966 = vmatprep.subr.bf16.mxu0 0
    %967 = vmatpush2.bf16.msra.mxu0 0
    %968 = vmatprep.mubr.bf16.mxu0 0
    %969 = vmatmul.mubr.bf16.gmra.mxu0 %v893
    %v970 = vpop.f32.mrf.mxu0
    %v971 = vadd.f32 %v930, %v970
    %v972 = vpop.f32.mrf.mxu0
    %v973 = vpop.f32.mrf.mxu0
    %v974 = vadd.f32 %v933, %v973
    %v975 = vpop.f32.mrf.mxu0
    %976 = vdwg.mxu0
    %v977 = vld [vmem:[%s4] sm:$0x1]
    %v979 = vlaneseq
    %v980 = vshrl.u32 %v979, 7
    %v981 = vsub.s32 0, %v980
    %v982 = vrot.slane %v977, %v981
    %v984 = vadd.f32 %v971, %v982
    %v985 = vadd.f32 %v974, %v982
    %v986 = vmax.f32 %v984, 0.0
    %v987 = vmax.f32 %v985, 0.0
    %vm988 = vcmask 516096
    %989 = vst.msk [vmem:[#allocation3] sm:$0x1] %vm988, %v986
    %v992 = vunpack.c.l.s4 1983009808
    %v993 = vunpack.c.0.s8 %v992
    %v994 = vlaneseq
    %v995 = vshrl.u32 %v994, 7
    %v996 = vsub.s32 %v993, %v995
    %v997 = vrot.slane %v986, %v996
    %v998 = vrot.slane %v997, 7
    %v999 = vrot.slane %v998, 2
    %1000 = vrot.lane.b32.xlu0 %v999, 64
    %v1001 = vpop.permute.xlu0 %1000
    %vm1003 = vcmask 1040896
    %1004 = vst.msk [vmem:[#allocation3] sm:$0x1] %vm1003, %v1001
    %v1005 = vcombine.high %v997, %v997
    %1007 = vst.msk [vmem:[#allocation3 + $0x2] sm:$0x1] %vm988, %v1005
    %v1008 = vrot.slane %v1005, 7
    %v1009 = vrot.slane %v1008, 2
    %1010 = vrot.lane.b32.xlu0 %v1009, 64
    %v1011 = vpop.permute.xlu0 %1010
    %1013 = vst.msk [vmem:[#allocation3 + $0x2] sm:$0x1] %vm1003, %v1011
    %v1014 = vcombine.high %v986, %v986
    %v1016 = vunpack.c.l.s4 1983009808
    %v1017 = vunpack.c.0.s8 %v1016
    %v1018 = vlaneseq
    %v1019 = vshrl.u32 %v1018, 7
    %v1020 = vsub.s32 %v1017, %v1019
    %v1021 = vrot.slane %v1014, %v1020
    %1023 = vst.msk [vmem:[#allocation3 + $0x4] sm:$0x1] %vm988, %v1021
    %v1024 = vrot.slane %v1021, 7
    %v1025 = vrot.slane %v1024, 2
    %1026 = vrot.lane.b32.xlu0 %v1025, 64
    %v1027 = vpop.permute.xlu0 %1026
    %1029 = vst.msk [vmem:[#allocation3 + $0x4] sm:$0x1] %vm1003, %v1027
    %v1030 = vcombine.high %v1021, %v1021
    %1032 = vst.msk [vmem:[#allocation3 + $0x6] sm:$0x1] %vm988, %v1030
    %v1033 = vrot.slane %v1030, 7
    %v1034 = vrot.slane %v1033, 2
    %1035 = vrot.lane.b32.xlu0 %v1034, 64
    %v1036 = vpop.permute.xlu0 %1035
    %1038 = vst.msk [vmem:[#allocation3 + $0x6] sm:$0x1] %vm1003, %v1036
    %1039 = vst.msk [vmem:[#allocation3 + $0x1] sm:$0x1] %vm988, %v987
    %v1042 = vunpack.c.l.s4 1983009808
    %v1043 = vunpack.c.0.s8 %v1042
    %v1044 = vlaneseq
    %v1045 = vshrl.u32 %v1044, 7
    %v1046 = vsub.s32 %v1043, %v1045
    %v1047 = vrot.slane %v987, %v1046
    %v1048 = vrot.slane %v1047, 7
    %v1049 = vrot.slane %v1048, 2
    %1050 = vrot.lane.b32.xlu0 %v1049, 64
    %v1051 = vpop.permute.xlu0 %1050
    %1053 = vst.msk [vmem:[#allocation3 + $0x1] sm:$0x1] %vm1003, %v1051
    %v1054 = vcombine.high %v1047, %v1047
    %1056 = vst.msk [vmem:[#allocation3 + $0x3] sm:$0x1] %vm988, %v1054
    %v1057 = vrot.slane %v1054, 7
    %v1058 = vrot.slane %v1057, 2
    %1059 = vrot.lane.b32.xlu0 %v1058, 64
    %v1060 = vpop.permute.xlu0 %1059
    %1062 = vst.msk [vmem:[#allocation3 + $0x3] sm:$0x1] %vm1003, %v1060
    %v1063 = vcombine.high %v987, %v987
    %v1065 = vunpack.c.l.s4 1983009808
    %v1066 = vunpack.c.0.s8 %v1065
    %v1067 = vlaneseq
    %v1068 = vshrl.u32 %v1067, 7
    %v1069 = vsub.s32 %v1066, %v1068
    %v1070 = vrot.slane %v1063, %v1069
    %1072 = vst.msk [vmem:[#allocation3 + $0x5] sm:$0x1] %vm988, %v1070
    %v1073 = vrot.slane %v1070, 7
    %v1074 = vrot.slane %v1073, 2
    %1075 = vrot.lane.b32.xlu0 %v1074, 64
    %v1076 = vpop.permute.xlu0 %1075
    %1078 = vst.msk [vmem:[#allocation3 + $0x5] sm:$0x1] %vm1003, %v1076
    %v1079 = vcombine.high %v1070, %v1070
    %1081 = vst.msk [vmem:[#allocation3 + $0x7] sm:$0x1] %vm988, %v1079
    %v1082 = vrot.slane %v1079, 7
    %v1083 = vrot.slane %v1082, 2
    %1084 = vrot.lane.b32.xlu0 %v1083, 64
    %v1085 = vpop.permute.xlu0 %1084
    %1087 = vst.msk [vmem:[#allocation3 + $0x7] sm:$0x1] %vm1003, %v1085
    %v1088 = vld [vmem:[#allocation3] sm:$0xff]
    %v1090 = vcombine.high %v1088, %v1088
    %v1092 = vunpack.c.l.s4 1983009808
    %v1093 = vunpack.c.0.s8 %v1092
    %v1094 = vlaneseq
    %v1095 = vshrl.u32 %v1094, 7
    %v1096 = vsub.s32 %v1093, %v1095
    %v1097 = vrot.slane %v1088, %v1096
    %v1099 = vunpack.c.l.s4 1983009808
    %v1100 = vunpack.c.0.s8 %v1099
    %v1101 = vlaneseq
    %v1102 = vshrl.u32 %v1101, 7
    %v1103 = vsub.s32 %v1100, %v1102
    %v1104 = vrot.slane %v1090, %v1103
    %v1105 = vcombine.high %v1097, %v1097
    %v1106 = vcombine.high %v1104, %v1104
    %v1111 = vpack.c.bf16 %v1097, %v1097
    %v1112 = vpack.c.bf16 %v1105, %v1105
    %v1113 = vpack.c.bf16 %v1104, %v1104
    %v1114 = vpack.c.bf16 %v1106, %v1106
    %v1115 = vld [vmem:[%s5] sm:$0xf]
    %v1116 = vld [vmem:[%s5 + $0x4] sm:$0xf]
    %v1117 = vld [vmem:[%s5 + $0x8] sm:$0xf]
    %v1118 = vld [vmem:[%s5 + $0xc] sm:$0xf]
    %v1119 = vld [vmem:[%s5 + $0x10] sm:$0xf]
    %v1120 = vld [vmem:[%s5 + $0x14] sm:$0xf]
    %v1121 = vld [vmem:[%s5 + $0x18] sm:$0xf]
    %v1122 = vld [vmem:[%s5 + $0x1c] sm:$0xf]
    %v1123 = vld [vmem:[%s5 + $0x20] sm:$0xf]
    %v1124 = vld [vmem:[%s5 + $0x24] sm:$0xf]
    %v1125 = vld [vmem:[%s5 + $0x28] sm:$0xf]
    %v1126 = vld [vmem:[%s5 + $0x2c] sm:$0xf]
    %v1127 = vld [vmem:[%s5 + $0x30] sm:$0xf]
    %v1128 = vld [vmem:[%s5 + $0x34] sm:$0xf]
    %v1129 = vld [vmem:[%s5 + $0x38] sm:$0xf]
    %v1130 = vld [vmem:[%s5 + $0x3c] sm:$0xf]
    %v1131 = vld [vmem:[%s5 + $0x40] sm:$0xf]
    %v1132 = vld [vmem:[%s5 + $0x44] sm:$0xf]
    %v1133 = vld [vmem:[%s5 + $0x48] sm:$0xf]
    %v1134 = vld [vmem:[%s5 + $0x4c] sm:$0xf]
    %v1135 = vld [vmem:[%s5 + $0x50] sm:$0xf]
    %v1136 = vld [vmem:[%s5 + $0x54] sm:$0xf]
    %v1137 = vld [vmem:[%s5 + $0x58] sm:$0xf]
    %v1138 = vld [vmem:[%s5 + $0x5c] sm:$0xf]
    %v1139 = vld [vmem:[%s5 + $0x60] sm:$0xf]
    %v1140 = vld [vmem:[%s5 + $0x64] sm:$0xf]
    %v1141 = vld [vmem:[%s5 + $0x68] sm:$0xf]
    %v1142 = vld [vmem:[%s5 + $0x6c] sm:$0xf]
    %v1143 = vld [vmem:[%s5 + $0x70] sm:$0xf]
    %v1144 = vld [vmem:[%s5 + $0x74] sm:$0xf]
    %v1145 = vld [vmem:[%s5 + $0x78] sm:$0xf]
    %v1146 = vld [vmem:[%s5 + $0x7c] sm:$0xf]
    %v1147 = vld [vmem:[%s5 + $0x80] sm:$0xf]
    %v1148 = vld [vmem:[%s5 + $0x84] sm:$0xf]
    %v1149 = vld [vmem:[%s5 + $0x88] sm:$0xf]
    %v1150 = vld [vmem:[%s5 + $0x8c] sm:$0xf]
    %v1151 = vld [vmem:[%s5 + $0x90] sm:$0xf]
    %v1152 = vld [vmem:[%s5 + $0x94] sm:$0xf]
    %v1153 = vld [vmem:[%s5 + $0x98] sm:$0xf]
    %v1154 = vld [vmem:[%s5 + $0x9c] sm:$0xf]
    %v1155 = vld [vmem:[%s5 + $0xa0] sm:$0xf]
    %v1156 = vld [vmem:[%s5 + $0xa4] sm:$0xf]
    %v1157 = vld [vmem:[%s5 + $0xa8] sm:$0xf]
    %v1158 = vld [vmem:[%s5 + $0xac] sm:$0xf]
    %v1159 = vld [vmem:[%s5 + $0xb0] sm:$0xf]
    %v1160 = vld [vmem:[%s5 + $0xb4] sm:$0xf]
    %v1161 = vld [vmem:[%s5 + $0xb8] sm:$0xf]
    %v1162 = vld [vmem:[%s5 + $0xbc] sm:$0xf]
    %v1163 = vld [vmem:[%s5 + $0xc0] sm:$0xf]
    %v1164 = vld [vmem:[%s5 + $0xc4] sm:$0xf]
    %v1165 = vld [vmem:[%s5 + $0xc8] sm:$0xf]
    %v1166 = vld [vmem:[%s5 + $0xcc] sm:$0xf]
    %v1167 = vld [vmem:[%s5 + $0xd0] sm:$0xf]
    %v1168 = vld [vmem:[%s5 + $0xd4] sm:$0xf]
    %v1169 = vld [vmem:[%s5 + $0xd8] sm:$0xf]
    %v1170 = vld [vmem:[%s5 + $0xdc] sm:$0xf]
    %v1171 = vld [vmem:[%s5 + $0xe0] sm:$0xf]
    %v1172 = vld [vmem:[%s5 + $0xe4] sm:$0xf]
    %v1173 = vld [vmem:[%s5 + $0xe8] sm:$0xf]
    %v1174 = vld [vmem:[%s5 + $0xec] sm:$0xf]
    %v1175 = vld [vmem:[%s5 + $0xf0] sm:$0xf]
    %v1176 = vld [vmem:[%s5 + $0xf4] sm:$0xf]
    %v1177 = vld [vmem:[%s5 + $0xf8] sm:$0xf]
    %v1178 = vld [vmem:[%s5 + $0xfc] sm:$0xf]
    %v1179 = vld [vmem:[%s6] sm:$0x1]
    %v1181 = vlaneseq
    %v1182 = vshrl.u32 %v1181, 7
    %v1183 = vsub.s32 0, %v1182
    %v1184 = vrot.slane %v1179, %v1183
    %v1250 = vunpack.c.l.b16 %v1115
    %v1251 = vunpack.c.l.b16 %v1116
    %v1252 = vunpack.c.l.b16 %v1117
    %v1253 = vunpack.c.l.b16 %v1118
    %v1254 = vunpack.c.l.b16 %v1119
    %v1255 = vunpack.c.l.b16 %v1120
    %v1256 = vunpack.c.l.b16 %v1121
    %v1257 = vunpack.c.l.b16 %v1122
    %v1258 = vunpack.c.l.b16 %v1123
    %v1259 = vunpack.c.l.b16 %v1124
    %v1260 = vunpack.c.l.b16 %v1125
    %v1261 = vunpack.c.l.b16 %v1126
    %v1262 = vunpack.c.l.b16 %v1127
    %v1263 = vunpack.c.l.b16 %v1128
    %v1264 = vunpack.c.l.b16 %v1129
    %v1265 = vunpack.c.l.b16 %v1130
    %v1266 = vunpack.c.l.b16 %v1131
    %v1267 = vunpack.c.l.b16 %v1132
    %v1268 = vunpack.c.l.b16 %v1133
    %v1269 = vunpack.c.l.b16 %v1134
    %v1270 = vunpack.c.l.b16 %v1135
    %v1271 = vunpack.c.l.b16 %v1136
    %v1272 = vunpack.c.l.b16 %v1137
    %v1273 = vunpack.c.l.b16 %v1138
    %v1274 = vunpack.c.l.b16 %v1139
    %v1275 = vunpack.c.l.b16 %v1140
    %v1276 = vunpack.c.l.b16 %v1141
    %v1277 = vunpack.c.l.b16 %v1142
    %v1278 = vunpack.c.l.b16 %v1143
    %v1279 = vunpack.c.l.b16 %v1144
    %v1280 = vunpack.c.l.b16 %v1145
    %v1281 = vunpack.c.l.b16 %v1146
    %v1282 = vunpack.c.l.b16 %v1147
    %v1283 = vunpack.c.l.b16 %v1148
    %v1284 = vunpack.c.l.b16 %v1149
    %v1285 = vunpack.c.l.b16 %v1150
    %v1286 = vunpack.c.l.b16 %v1151
    %v1287 = vunpack.c.l.b16 %v1152
    %v1288 = vunpack.c.l.b16 %v1153
    %v1289 = vunpack.c.l.b16 %v1154
    %v1290 = vunpack.c.l.b16 %v1155
    %v1291 = vunpack.c.l.b16 %v1156
    %v1292 = vunpack.c.l.b16 %v1157
    %v1293 = vunpack.c.l.b16 %v1158
    %v1294 = vunpack.c.l.b16 %v1159
    %v1295 = vunpack.c.l.b16 %v1160
    %v1296 = vunpack.c.l.b16 %v1161
    %v1297 = vunpack.c.l.b16 %v1162
    %v1298 = vunpack.c.l.b16 %v1163
    %v1299 = vunpack.c.l.b16 %v1164
    %v1300 = vunpack.c.l.b16 %v1165
    %v1301 = vunpack.c.l.b16 %v1166
    %v1302 = vunpack.c.l.b16 %v1167
    %v1303 = vunpack.c.l.b16 %v1168
    %v1304 = vunpack.c.l.b16 %v1169
    %v1305 = vunpack.c.l.b16 %v1170
    %v1306 = vunpack.c.l.b16 %v1171
    %v1307 = vunpack.c.l.b16 %v1172
    %v1308 = vunpack.c.l.b16 %v1173
    %v1309 = vunpack.c.l.b16 %v1174
    %v1310 = vunpack.c.l.b16 %v1175
    %v1311 = vunpack.c.l.b16 %v1176
    %v1312 = vunpack.c.l.b16 %v1177
    %v1313 = vunpack.c.l.b16 %v1178
    %v1314 = vpack.c.b16 %v1251, %v1250
    %v1315 = vpack.c.b16 %v1253, %v1252
    %v1316 = vpack.c.b16 %v1255, %v1254
    %v1317 = vpack.c.b16 %v1257, %v1256
    %v1318 = vpack.c.b16 %v1259, %v1258
    %v1319 = vpack.c.b16 %v1261, %v1260
    %v1320 = vpack.c.b16 %v1263, %v1262
    %v1321 = vpack.c.b16 %v1265, %v1264
    %v1322 = vpack.c.b16 %v1267, %v1266
    %v1323 = vpack.c.b16 %v1269, %v1268
    %v1324 = vpack.c.b16 %v1271, %v1270
    %v1325 = vpack.c.b16 %v1273, %v1272
    %v1326 = vpack.c.b16 %v1275, %v1274
    %v1327 = vpack.c.b16 %v1277, %v1276
    %v1328 = vpack.c.b16 %v1279, %v1278
    %v1329 = vpack.c.b16 %v1281, %v1280
    %v1330 = vpack.c.b16 %v1283, %v1282
    %v1331 = vpack.c.b16 %v1285, %v1284
    %v1332 = vpack.c.b16 %v1287, %v1286
    %v1333 = vpack.c.b16 %v1289, %v1288
    %v1334 = vpack.c.b16 %v1291, %v1290
    %v1335 = vpack.c.b16 %v1293, %v1292
    %v1336 = vpack.c.b16 %v1295, %v1294
    %v1337 = vpack.c.b16 %v1297, %v1296
    %v1338 = vpack.c.b16 %v1299, %v1298
    %v1339 = vpack.c.b16 %v1301, %v1300
    %v1340 = vpack.c.b16 %v1303, %v1302
    %v1341 = vpack.c.b16 %v1305, %v1304
    %v1342 = vpack.c.b16 %v1307, %v1306
    %v1343 = vpack.c.b16 %v1309, %v1308
    %v1344 = vpack.c.b16 %v1311, %v1310
    %v1345 = vpack.c.b16 %v1313, %v1312
    %1378 = vmatprep.subr.bf16.mxu0 0
    %1379 = vmatpush1.bf16.msra.mxu0 %v1321
    %1380 = vmatprep.subr.bf16.mxu0 0
    %1381 = vmatpush1.bf16.msra.mxu0 %v1320
    %1382 = vmatprep.subr.bf16.mxu0 0
    %1383 = vmatpush1.bf16.msra.mxu0 %v1319
    %1384 = vmatprep.subr.bf16.mxu0 0
    %1385 = vmatpush1.bf16.msra.mxu0 %v1318
    %1386 = vmatprep.subr.bf16.mxu0 0
    %1387 = vmatpush1.bf16.msra.mxu0 %v1317
    %1388 = vmatprep.subr.bf16.mxu0 0
    %1389 = vmatpush1.bf16.msra.mxu0 %v1316
    %1390 = vmatprep.subr.bf16.mxu0 0
    %1391 = vmatpush1.bf16.msra.mxu0 %v1315
    %1392 = vmatprep.subr.bf16.mxu0 0
    %1393 = vmatpush1.bf16.msra.mxu0 %v1314
    %1394 = vmatprep.subr.bf16.mxu0 0
    %1395 = vmatpush2.bf16.msra.mxu0 %v1329
    %1396 = vmatprep.subr.bf16.mxu0 0
    %1397 = vmatpush2.bf16.msra.mxu0 %v1328
    %1398 = vmatprep.subr.bf16.mxu0 0
    %1399 = vmatpush2.bf16.msra.mxu0 %v1327
    %1400 = vmatprep.subr.bf16.mxu0 0
    %1401 = vmatpush2.bf16.msra.mxu0 %v1326
    %1402 = vmatprep.subr.bf16.mxu0 0
    %1403 = vmatpush2.bf16.msra.mxu0 %v1325
    %1404 = vmatprep.subr.bf16.mxu0 0
    %1405 = vmatpush2.bf16.msra.mxu0 %v1324
    %1406 = vmatprep.subr.bf16.mxu0 0
    %1407 = vmatpush2.bf16.msra.mxu0 %v1323
    %1408 = vmatprep.subr.bf16.mxu0 0
    %1409 = vmatpush2.bf16.msra.mxu0 %v1322
    %1410 = vmatprep.mubr.bf16.mxu0 %v1112
    %1411 = vmatmul.mubr.bf16.gmra.mxu0 %v1111
    %v1412 = vpop.f32.mrf.mxu0
    %v1413 = vadd.f32 %v1184, %v1412
    %v1414 = vpop.f32.mrf.mxu0
    %v1415 = vpop.f32.mrf.mxu0
    %v1416 = vpop.f32.mrf.mxu0
    %1417 = vdwg.mxu0
    %1418 = vmatprep.subr.bf16.mxu0 0
    %1419 = vmatpush1.bf16.msra.mxu0 %v1337
    %1420 = vmatprep.subr.bf16.mxu0 0
    %1421 = vmatpush1.bf16.msra.mxu0 %v1336
    %1422 = vmatprep.subr.bf16.mxu0 0
    %1423 = vmatpush1.bf16.msra.mxu0 %v1335
    %1424 = vmatprep.subr.bf16.mxu0 0
    %1425 = vmatpush1.bf16.msra.mxu0 %v1334
    %1426 = vmatprep.subr.bf16.mxu0 0
    %1427 = vmatpush1.bf16.msra.mxu0 %v1333
    %1428 = vmatprep.subr.bf16.mxu0 0
    %1429 = vmatpush1.bf16.msra.mxu0 %v1332
    %1430 = vmatprep.subr.bf16.mxu0 0
    %1431 = vmatpush1.bf16.msra.mxu0 %v1331
    %1432 = vmatprep.subr.bf16.mxu0 0
    %1433 = vmatpush1.bf16.msra.mxu0 %v1330
    %1434 = vmatprep.subr.bf16.mxu0 0
    %1435 = vmatpush2.bf16.msra.mxu0 %v1345
    %1436 = vmatprep.subr.bf16.mxu0 0
    %1437 = vmatpush2.bf16.msra.mxu0 %v1344
    %1438 = vmatprep.subr.bf16.mxu0 0
    %1439 = vmatpush2.bf16.msra.mxu0 %v1343
    %1440 = vmatprep.subr.bf16.mxu0 0
    %1441 = vmatpush2.bf16.msra.mxu0 %v1342
    %1442 = vmatprep.subr.bf16.mxu0 0
    %1443 = vmatpush2.bf16.msra.mxu0 %v1341
    %1444 = vmatprep.subr.bf16.mxu0 0
    %1445 = vmatpush2.bf16.msra.mxu0 %v1340
    %1446 = vmatprep.subr.bf16.mxu0 0
    %1447 = vmatpush2.bf16.msra.mxu0 %v1339
    %1448 = vmatprep.subr.bf16.mxu0 0
    %1449 = vmatpush2.bf16.msra.mxu0 %v1338
    %1450 = vmatprep.mubr.bf16.mxu0 %v1114
    %1451 = vmatmul.mubr.bf16.gmra.mxu0 %v1113
    %v1452 = vpop.f32.mrf.mxu0
    %v1453 = vadd.f32 %v1413, %v1452
    %v1454 = vpop.f32.mrf.mxu0
    %v1455 = vpop.f32.mrf.mxu0
    %v1456 = vpop.f32.mrf.mxu0
    %1457 = vdwg.mxu0
    %1458 = vst [vmem:[#allocation4] sm:$0x3] %v1453
    // Predicated region
    $region30: #{convnet_forward.1} parent=1 // pred_check
      _
    $region31: #{convnet_forward.1} parent=1 // pred_check_branch
      %1460 = sbr.rel (0) target = $region33
    $region32: #{convnet_forward.1} parent=1 // pred_region
      %s1462 = ssub.s32 32, 32
      %1463 = vsyncadd [#allocation5], %s1462
      %s1465 = sshll.u32 [#allocation4], 4
      %s1466 = int_to_ptr.vmem [resolvable:$true] %s1465
      %1468 = dma.vmem_to_hbm [thread:$0]  %s1466, 32, %s7, [#allocation5]
    $region33: #{convnet_forward.1} parent=1 // pred_fallthru
      _
    // Predicated region
    $region34: #{convnet_forward.1} parent=1 // pred_check
      _
    $region35: #{convnet_forward.1} parent=1 // pred_check_branch
      %1470 = sbr.rel (0) target = $region37
    $region36: #{convnet_forward.1} parent=1 // pred_region
      %1471 = dma.done [#allocation5], 32
    $region37: #{convnet_forward.1} parent=1 // pred_fallthru
      _
    %1472 = vsyncpa [#allocation5], 1

</llo_original>
